<compile_context>
chip_gen: v6e
topology: v6e:2x2x1
jax: 0.10.0
libtpu: 0.0.40
codegen_flags: <defaults>
</compile_context>

<pallas_src>
import jax
import jax.numpy as jnp
from jax.experimental import pallas as pl
from jax.experimental.pallas import tpu as pltpu


def _vq_kernel(z_ref, e_ref, idx_ref, loss_ref):
    # z_ref: (tm, D) raw tokens; e_ref: (K, D) pre-normalized codebook (f32).
    z = z_ref[...].astype(jnp.float32)
    e_n = e_ref[...]
    K = e_n.shape[0]

    # F.normalize(z, dim=-1): z * rsqrt(max(||z||^2, eps^2))   (single EUP op)
    eps = 1e-12
    z_sq = jnp.sum(z * z, axis=-1, keepdims=True)
    z_n = z * jax.lax.rsqrt(jnp.maximum(z_sq, eps * eps))

    # Cosine similarity with tokens on the lane axis: (K, tm).
    # Contract dim 1 of both operands -> no explicit transpose of the codebook.
    sim = jax.lax.dot_general(
        e_n, z_n, (((1,), (1,)), ((), ())), preferred_element_type=jnp.float32
    )

    # argmax over the codebook axis, first-occurrence tie-break (== torch.argmin of d):
    # mask non-maximal rows to K and take the min row index (mask reused, no 2nd compare).
    row = jax.lax.broadcasted_iota(jnp.int32, sim.shape, 0)
    max_sim = jnp.max(sim, axis=0, keepdims=True)                 # (1, tm)
    masked = jnp.where(sim == max_sim, row, K)                    # (K, tm) i32
    idx_ref[...] = jnp.min(masked, axis=0, keepdims=True)         # (1, tm) i32

    # per-token squared error on unit vectors: ||z_q - z_n||^2 = 2 - 2*cos   (lane-dense)
    loss_ref[...] = 2.0 - 2.0 * max_sim


def _tile_and_vmem_defaults():
    """Generation-aware (tm, vmem_limit_bytes); conservative fallback if unknown."""
    try:
        phys = getattr(pltpu.get_tpu_info(), "vmem_capacity_bytes", None)
    except Exception:
        phys = None
    if phys is None:
        return 256, 48 * 1024 * 1024                      # fits every generation
    if phys <= 80 * 1024 * 1024:                           # v7x-class: 64 MiB per TC
        return 256, int((phys * 3) // 4)                   # ~48 MiB, leave headroom
    return 512, int(min((phys * 3) // 4, 96 * 1024 * 1024))  # v5e / v6e: 128 MiB phys


def _build_vq_call(G, tm, K, D, M_pad, vmem_limit, single_buffer_codebook):
    if single_buffer_codebook:
        # Constant index_map -> the second pipeline buffer is pure waste; single-buffer.
        e_spec = pl.BlockSpec(
            (K, D), lambda i: (0, 0), pipeline_mode=pl.Buffered(buffer_count=1)
        )
    else:
        e_spec = pl.BlockSpec((K, D), lambda i: (0, 0))
    return pl.pallas_call(
        _vq_kernel,
        out_shape=(
            jax.ShapeDtypeStruct((1, M_pad), jnp.int32),    # lane-dense encoding indices
            jax.ShapeDtypeStruct((1, M_pad), jnp.float32),  # lane-dense per-token sq. err
        ),
        grid_spec=pltpu.PrefetchScalarGridSpec(
            num_scalar_prefetch=0,
            grid=(G,),
            in_specs=[
                pl.BlockSpec((tm, D), lambda i: (i, 0)),    # token tile
                e_spec,                                     # full pre-normalized codebook
            ],
            out_specs=[
                pl.BlockSpec((1, tm), lambda i: (0, i)),
                pl.BlockSpec((1, tm), lambda i: (0, i)),
            ],
        ),
        compiler_params=pltpu.CompilerParams(
            # No cross-step state -> megacore-shardable on v7x.
            dimension_semantics=("parallel",),
            vmem_limit_bytes=int(vmem_limit),
        ),
    )


def base_quantizer_forward(z, embedding, *, beta=0.25, tm=None):
    """z: (B, N, D) float32 tokens; embedding: (n_embed, D) raw codebook weights."""
    B, N, D = z.shape
    M = B * N
    K = embedding.shape[0]

    auto_tm, vmem_limit = _tile_and_vmem_defaults()
    if tm is None:
        tm = auto_tm

    # Pad the token axis up to a multiple of tm (never shrink tm below sublane/lane
    # density); padded tokens are masked out of idx/loss below.
    G = pl.cdiv(M, tm)
    M_pad = G * tm
    z_flat = z.reshape(M, D).astype(jnp.float32)
    if M_pad != M:
        z_flat = jnp.pad(z_flat, ((0, M_pad - M), (0, 0)))

    # Hoist the codebook normalization out of the grid loop (done once, plain JAX).
    eps = 1e-12
    e_f32 = embedding.astype(jnp.float32)
    e_sq = jnp.sum(e_f32 * e_f32, axis=-1, keepdims=True)
    e_n = e_f32 * jax.lax.rsqrt(jnp.maximum(e_sq, eps * eps))

    try:
        idx_rows, loss_rows = _build_vq_call(G, tm, K, D, M_pad, vmem_limit, True)(
            z_flat, e_n
        )
        jax.block_until_ready((idx_rows, loss_rows))
    except Exception:
        # Fallback: this jax build rejected buffer_count=1 -> default double buffering.
        idx_rows, loss_rows = _build_vq_call(G, tm, K, D, M_pad, vmem_limit, False)(
            z_flat, e_n
        )

    idx_flat = idx_rows[0, :M]
    encoding_indices = idx_flat.reshape(B, N)

    # z_q: gather normalized codebook rows outside the kernel (bit-exact; avoids the
    # in-kernel one-hot matmul and its (K, tm) temporary entirely).
    z_q = e_n[idx_flat].reshape(B, N, D)

    # loss = beta * mse(sg(z_q), z_n) + mse(z_q, sg(z_n))  -> forward value = (1+beta)*mse
    per_token = loss_rows[0, :M]
    mse = jnp.sum(per_token) / (M * D)
    loss = (1.0 + beta) * mse

    # straight-through estimator: z + (z_q - z).detach()   (forward value == z_q)
    z_q = z + jax.lax.stop_gradient(z_q - z)

    loss_tensor = None
    return z_q, loss, loss_tensor, encoding_indices


if __name__ == "__main__":
    # small shapes: batch=2, seq=64 tokens, embed_dim=32, n_embed=256
    B, N, D, K = 2, 64, 32, 256
    key = jax.random.PRNGKey(0)
    kz, ke = jax.random.split(key)
    z = jax.random.normal(kz, (B, N, D), dtype=jnp.float32)
    embedding = jax.random.normal(ke, (K, D), dtype=jnp.float32)  # Embedding.weight.data.normal_()

    z_q, loss, loss_tensor, indices = base_quantizer_forward(z, embedding, beta=0.25)
    jax.block_until_ready((z_q, loss, indices))

    assert z_q.shape == (B, N, D) and z_q.dtype == jnp.float32
    assert indices.shape == (B, N) and indices.dtype == jnp.int32
    assert loss.shape == ()

    # self-consistency checks (no flaky cross-implementation argmax comparison):
    idx_flat = indices.reshape(-1)
    assert bool(jnp.all((idx_flat >= 0) & (idx_flat < K)))
    e_norm = embedding / jnp.maximum(jnp.linalg.norm(embedding, axis=-1, keepdims=True), 1e-12)
    z_norm = z / jnp.maximum(jnp.linalg.norm(z, axis=-1, keepdims=True), 1e-12)
    # z_q forward value equals the normalized codebook row picked by the kernel's own index
    assert bool(jnp.allclose(z_q, e_norm[indices], atol=1e-5))
    # loss (2 - 2*max_sim path) matches a diff-based recomputation from the kernel's outputs
    mse_ref = jnp.mean((e_norm[indices] - z_norm) ** 2)
    assert bool(jnp.allclose(loss, 1.25 * mse_ref, rtol=1e-4, atol=1e-6))
    assert bool(jnp.isfinite(loss))

    print("KERNEL_OK")
</pallas_src>

<mosaic_0001>
module attributes {stable_mosaic.version = 11 : i64} {
  func.func @_vq_kernel(%arg0: i32, %arg1: memref<256x32xf32, #tpu.memory_space<vmem>>, %arg2: memref<256x32xf32, #tpu.memory_space<vmem>>, %arg3: memref<1x256xi32, #tpu.memory_space<vmem>>, %arg4: memref<1x256xf32, #tpu.memory_space<vmem>>) attributes {dimension_semantics = [#tpu.dimension_semantics<parallel>], iteration_bounds = array<i64: 1>, scalar_prefetch = 0 : i64, scratch_operands = 0 : i64, tpu.core_type = #tpu.core_type<tc>, window_params = [{transform_indices = @transform_0, window_bounds = array<i64: 256, 32>}, {pipeline_mode = #tpu.pipeline_mode<synchronous>, transform_indices = @transform_1, window_bounds = array<i64: 256, 32>}, {transform_indices = @transform_2, window_bounds = array<i64: 1, 256>}, {transform_indices = @transform_3, window_bounds = array<i64: 1, 256>}]} {
    %c0 = arith.constant 0 : index
    %c0_0 = arith.constant 0 : index
    %0 = vector.load %arg1[%c0, %c0_0] : memref<256x32xf32, #tpu.memory_space<vmem>>, vector<256x32xf32>
    %c0_1 = arith.constant 0 : index
    %c0_2 = arith.constant 0 : index
    %1 = vector.load %arg2[%c0_1, %c0_2] : memref<256x32xf32, #tpu.memory_space<vmem>>, vector<256x32xf32>
    %2 = arith.mulf %0, %0 : vector<256x32xf32>
    %cst = arith.constant dense<0.000000e+00> : vector<256xf32>
    %3 = vector.multi_reduction <add>, %2, %cst [1] : vector<256x32xf32> to vector<256xf32>
    %4 = vector.shape_cast %3 : vector<256xf32> to vector<256x1xf32>
    %cst_3 = arith.constant 1.000000e-24 : f32
    %5 = vector.broadcast %cst_3 : f32 to vector<256x1xf32>
    %6 = arith.maximumf %4, %5 : vector<256x1xf32>
    %7 = math.rsqrt %6 : vector<256x1xf32>
    %8 = vector.broadcast %7 : vector<256x1xf32> to vector<256x32xf32>
    %9 = arith.mulf %0, %8 : vector<256x32xf32>
    %cst_4 = arith.constant dense<0.000000e+00> : vector<256x256xf32>
    %10 = tpu.matmul %1, %9, %cst_4 {dimension_numbers = #tpu.dot_dimension_numbers<[1], [1], [0], [0], [0, 0, 1, 0], [], []>} : vector<256x32xf32>, vector<256x32xf32>, vector<256x256xf32> -> vector<256x256xf32>
    %11 = tpu.iota {dimensions = array<i32: 0>} : vector<256x256xi32>
    %cst_5 = arith.constant dense<0xFF800000> : vector<256xf32>
    %12 = vector.multi_reduction <maximumf>, %10, %cst_5 [0] : vector<256x256xf32> to vector<256xf32>
    %13 = vector.shape_cast %12 : vector<256xf32> to vector<1x256xf32>
    %14 = vector.broadcast %13 : vector<1x256xf32> to vector<256x256xf32>
    %15 = arith.cmpf oeq, %10, %14 : vector<256x256xf32>
    %c256_i32 = arith.constant 256 : i32
    %16 = vector.broadcast %c256_i32 : i32 to vector<256x256xi32>
    %17 = arith.select %15, %11, %16 : vector<256x256xi1>, vector<256x256xi32>
    %cst_6 = arith.constant dense<2147483647> : vector<256xi32>
    %18 = vector.multi_reduction <minsi>, %17, %cst_6 [0] : vector<256x256xi32> to vector<256xi32>
    %19 = vector.shape_cast %18 : vector<256xi32> to vector<1x256xi32>
    %c0_7 = arith.constant 0 : index
    %c0_8 = arith.constant 0 : index
    %20 = vector.load %arg3[%c0_7, %c0_8] : memref<1x256xi32, #tpu.memory_space<vmem>>, vector<1x256xi32>
    tpu.vector_store %arg3[%c0_7, %c0_8], %19 {strides = array<i32>} : memref<1x256xi32, #tpu.memory_space<vmem>>, vector<1x256xi32>,
    %cst_9 = arith.constant 2.000000e+00 : f32
    %21 = vector.broadcast %cst_9 : f32 to vector<1x256xf32>
    %22 = arith.mulf %21, %13 : vector<1x256xf32>
    %cst_10 = arith.constant 2.000000e+00 : f32
    %23 = vector.broadcast %cst_10 : f32 to vector<1x256xf32>
    %24 = arith.subf %23, %22 : vector<1x256xf32>
    %c0_11 = arith.constant 0 : index
    %c0_12 = arith.constant 0 : index
    %25 = vector.load %arg4[%c0_11, %c0_12] : memref<1x256xf32, #tpu.memory_space<vmem>>, vector<1x256xf32>
    tpu.vector_store %arg4[%c0_11, %c0_12], %24 {strides = array<i32>} : memref<1x256xf32, #tpu.memory_space<vmem>>, vector<1x256xf32>,
    return
  }
  func.func @transform_0(%arg0: i32) -> (i32, i32) {
    %c0_i32 = arith.constant 0 : i32
    %c0_i32_0 = arith.constant 0 : i32
    return %arg0, %c0_i32 : i32, i32
  }
  func.func @transform_1(%arg0: i32) -> (i32, i32) {
    %c0_i32 = arith.constant 0 : i32
    %c0_i32_0 = arith.constant 0 : i32
    %c0_i32_1 = arith.constant 0 : i32
    return %c0_i32, %c0_i32_0 : i32, i32
  }
  func.func @transform_2(%arg0: i32) -> (i32, i32) {
    %c0_i32 = arith.constant 0 : i32
    %c0_i32_0 = arith.constant 0 : i32
    return %c0_i32, %arg0 : i32, i32
  }
  func.func @transform_3(%arg0: i32) -> (i32, i32) {
    %c0_i32 = arith.constant 0 : i32
    %c0_i32_0 = arith.constant 0 : i32
    return %c0_i32, %arg0 : i32, i32
  }
}

module attributes {stable_mosaic.version = 11 : i64} {
  func.func @_vq_kernel(%arg0: i32, %arg1: memref<256x32xf32, #tpu.memory_space<vmem>>, %arg2: memref<256x32xf32, #tpu.memory_space<vmem>>, %arg3: memref<1x256xi32, #tpu.memory_space<vmem>>, %arg4: memref<1x256xf32, #tpu.memory_space<vmem>>) attributes {dimension_semantics = [#tpu.dimension_semantics<parallel>], iteration_bounds = array<i64: 1>, scalar_prefetch = 0 : i64, scratch_operands = 0 : i64, tpu.core_type = #tpu.core_type<tc>, window_params = [{transform_indices = @transform_0, window_bounds = array<i64: 256, 32>}, {pipeline_mode = #tpu.pipeline_mode<synchronous>, transform_indices = @transform_1, window_bounds = array<i64: 256, 32>}, {transform_indices = @transform_2, window_bounds = array<i64: 1, 256>}, {transform_indices = @transform_3, window_bounds = array<i64: 1, 256>}]} {
    %c0 = arith.constant 0 : index
    %c0_0 = arith.constant 0 : index
    %0 = vector.load %arg1[%c0, %c0_0] : memref<256x32xf32, #tpu.memory_space<vmem>>, vector<256x32xf32>
    %c0_1 = arith.constant 0 : index
    %c0_2 = arith.constant 0 : index
    %1 = vector.load %arg2[%c0_1, %c0_2] : memref<256x32xf32, #tpu.memory_space<vmem>>, vector<256x32xf32>
    %2 = arith.mulf %0, %0 : vector<256x32xf32>
    %cst = arith.constant dense<0.000000e+00> : vector<256xf32>
    %3 = vector.multi_reduction <add>, %2, %cst [1] : vector<256x32xf32> to vector<256xf32>
    %4 = vector.shape_cast %3 : vector<256xf32> to vector<256x1xf32>
    %cst_3 = arith.constant 1.000000e-24 : f32
    %5 = vector.broadcast %cst_3 : f32 to vector<256x1xf32>
    %6 = arith.maximumf %4, %5 : vector<256x1xf32>
    %7 = math.rsqrt %6 : vector<256x1xf32>
    %8 = vector.broadcast %7 : vector<256x1xf32> to vector<256x32xf32>
    %9 = arith.mulf %0, %8 : vector<256x32xf32>
    %cst_4 = arith.constant dense<0.000000e+00> : vector<256x256xf32>
    %10 = tpu.matmul %1, %9, %cst_4 {dimension_numbers = #tpu.dot_dimension_numbers<[1], [1], [0], [0], [0, 0, 1, 0], [], []>} : vector<256x32xf32>, vector<256x32xf32>, vector<256x256xf32> -> vector<256x256xf32>
    %11 = tpu.iota {dimensions = array<i32: 0>} : vector<256x256xi32>
    %cst_5 = arith.constant dense<0xFF800000> : vector<256xf32>
    %12 = vector.multi_reduction <maximumf>, %10, %cst_5 [0] : vector<256x256xf32> to vector<256xf32>
    %13 = vector.shape_cast %12 : vector<256xf32> to vector<1x256xf32>
    %14 = vector.broadcast %13 : vector<1x256xf32> to vector<256x256xf32>
    %15 = arith.cmpf oeq, %10, %14 : vector<256x256xf32>
    %c256_i32 = arith.constant 256 : i32
    %16 = vector.broadcast %c256_i32 : i32 to vector<256x256xi32>
    %17 = arith.select %15, %11, %16 : vector<256x256xi1>, vector<256x256xi32>
    %cst_6 = arith.constant dense<2147483647> : vector<256xi32>
    %18 = vector.multi_reduction <minsi>, %17, %cst_6 [0] : vector<256x256xi32> to vector<256xi32>
    %19 = vector.shape_cast %18 : vector<256xi32> to vector<1x256xi32>
    %c0_7 = arith.constant 0 : index
    %c0_8 = arith.constant 0 : index
    %20 = vector.load %arg3[%c0_7, %c0_8] : memref<1x256xi32, #tpu.memory_space<vmem>>, vector<1x256xi32>
    tpu.vector_store %arg3[%c0_7, %c0_8], %19 {strides = array<i32>} : memref<1x256xi32, #tpu.memory_space<vmem>>, vector<1x256xi32>,
    %cst_9 = arith.constant 2.000000e+00 : f32
    %21 = vector.broadcast %cst_9 : f32 to vector<1x256xf32>
    %22 = arith.mulf %21, %13 : vector<1x256xf32>
    %cst_10 = arith.constant 2.000000e+00 : f32
    %23 = vector.broadcast %cst_10 : f32 to vector<1x256xf32>
    %24 = arith.subf %23, %22 : vector<1x256xf32>
    %c0_11 = arith.constant 0 : index
    %c0_12 = arith.constant 0 : index
    %25 = vector.load %arg4[%c0_11, %c0_12] : memref<1x256xf32, #tpu.memory_space<vmem>>, vector<1x256xf32>
    tpu.vector_store %arg4[%c0_11, %c0_12], %24 {strides = array<i32>} : memref<1x256xf32, #tpu.memory_space<vmem>>, vector<1x256xf32>,
    return
  }
  func.func @transform_0(%arg0: i32) -> (i32, i32) {
    %c0_i32 = arith.constant 0 : i32
    %c0_i32_0 = arith.constant 0 : i32
    return %arg0, %c0_i32 : i32, i32
  }
  func.func @transform_1(%arg0: i32) -> (i32, i32) {
    %c0_i32 = arith.constant 0 : i32
    %c0_i32_0 = arith.constant 0 : i32
    %c0_i32_1 = arith.constant 0 : i32
    return %c0_i32, %c0_i32_0 : i32, i32
  }
  func.func @transform_2(%arg0: i32) -> (i32, i32) {
    %c0_i32 = arith.constant 0 : i32
    %c0_i32_0 = arith.constant 0 : i32
    return %c0_i32, %arg0 : i32, i32
  }
  func.func @transform_3(%arg0: i32) -> (i32, i32) {
    %c0_i32 = arith.constant 0 : i32
    %c0_i32_0 = arith.constant 0 : i32
    return %c0_i32, %arg0 : i32, i32
  }
}

</mosaic_0001>

<llo_original>
// kernel: tpu_custom_call.1
$region0: #{tpu_custom_call.1}
  #allocation0 [shape = 'u32[]', space=smem, size = 0x4, offset = 0x4, fixed_abs, tag = 'smem constant byte address 0x4 - core index']
  #allocation1 [shape = 'u32[144,128]{1,0:T(1,128)}', space=vmem, size = 0x12000, scoped, tag = 'internal scratch']
  %s0 = inlined_call_operand.vmem [shape: f32[256,32], index: 0, kind: input, shape index: {}]
  %s1 = inlined_call_operand.vmem [shape: f32[256,32], index: 1, kind: input, shape index: {}]
  %s2 = inlined_call_operand.hbm [shape: s32[1,256], index: 2, kind: output, shape index: {0}]
  %s3 = inlined_call_operand.hbm [shape: f32[1,256], index: 3, kind: output, shape index: {1}]
  %4 = xla_tuple %s2, %s3
  %s5 = sld [smem:[#allocation0]]
  $region26: #{tpu_custom_call.1} parent=0
    _
  %s7 = ssub.s32 1, %s5
  %s8 = scalar_select 0, %s7, %s5
  $region1: #{tpu_custom_call.1} parent=0
    #allocation2 [shape = 'u8[1024]{0}', space=vmem, size = 0x400, scoped, tag = 'output window, operand 0, single buffered']
    #allocation3 [shape = 's32[1]{0}', space=sflag, size = 0x4, scoped, tag = 'scoped memory for tpu_custom_call.1']
    #allocation4 [shape = 'u8[1024]{0}', space=vmem, size = 0x400, scoped, tag = 'output window, operand 1, single buffered']
    #allocation5 [shape = 's32[1]{0}', space=sflag, size = 0x4, scoped, tag = 'scoped memory for tpu_custom_call.1']
    %9 = vsyncpa [#allocation3], 0
    %10 = vsyncpa [#allocation5], 0
    // Predicated region
    $region2: #{tpu_custom_call.1} parent=1 // pred_check
      _
    $region3: #{tpu_custom_call.1} parent=1 // pred_check_branch
      %12 = sbr.rel (0) target = $region5
    $region4: #{tpu_custom_call.1} parent=1 // pred_region
      _
    $region5: #{tpu_custom_call.1} parent=1 // pred_fallthru
      _
    // Predicated region
    $region6: #{tpu_custom_call.1} parent=1 // pred_check
      _
    $region7: #{tpu_custom_call.1} parent=1 // pred_check_branch
      %14 = sbr.rel (0) target = $region9
    $region8: #{tpu_custom_call.1} parent=1 // pred_region
      _
    $region9: #{tpu_custom_call.1} parent=1 // pred_fallthru
      _
    %v15 = vld [vmem:[%s0] sm:$0xff]
    %v16 = vld [vmem:[%s0 + $0x8] sm:$0xff]
    %v17 = vld [vmem:[%s0 + $0x10] sm:$0xff]
    %v18 = vld [vmem:[%s0 + $0x18] sm:$0xff]
    %v19 = vld [vmem:[%s0 + $0x20] sm:$0xff]
    %v20 = vld [vmem:[%s0 + $0x28] sm:$0xff]
    %v21 = vld [vmem:[%s0 + $0x30] sm:$0xff]
    %v22 = vld [vmem:[%s0 + $0x38] sm:$0xff]
    %v23 = vld [vmem:[%s0 + $0x40] sm:$0xff]
    %v24 = vld [vmem:[%s0 + $0x48] sm:$0xff]
    %v25 = vld [vmem:[%s0 + $0x50] sm:$0xff]
    %v26 = vld [vmem:[%s0 + $0x58] sm:$0xff]
    %v27 = vld [vmem:[%s0 + $0x60] sm:$0xff]
    %v28 = vld [vmem:[%s0 + $0x68] sm:$0xff]
    %v29 = vld [vmem:[%s0 + $0x70] sm:$0xff]
    %v30 = vld [vmem:[%s0 + $0x78] sm:$0xff]
    %v31 = vld [vmem:[%s0 + $0x80] sm:$0xff]
    %v32 = vld [vmem:[%s0 + $0x88] sm:$0xff]
    %v33 = vld [vmem:[%s0 + $0x90] sm:$0xff]
    %v34 = vld [vmem:[%s0 + $0x98] sm:$0xff]
    %v35 = vld [vmem:[%s0 + $0xa0] sm:$0xff]
    %v36 = vld [vmem:[%s0 + $0xa8] sm:$0xff]
    %v37 = vld [vmem:[%s0 + $0xb0] sm:$0xff]
    %v38 = vld [vmem:[%s0 + $0xb8] sm:$0xff]
    %v39 = vld [vmem:[%s0 + $0xc0] sm:$0xff]
    %v40 = vld [vmem:[%s0 + $0xc8] sm:$0xff]
    %v41 = vld [vmem:[%s0 + $0xd0] sm:$0xff]
    %v42 = vld [vmem:[%s0 + $0xd8] sm:$0xff]
    %v43 = vld [vmem:[%s0 + $0xe0] sm:$0xff]
    %v44 = vld [vmem:[%s0 + $0xe8] sm:$0xff]
    %v45 = vld [vmem:[%s0 + $0xf0] sm:$0xff]
    %v46 = vld [vmem:[%s0 + $0xf8] sm:$0xff]
    %v47 = vld [vmem:[%s1] sm:$0xff]
    %v48 = vld [vmem:[%s1 + $0x8] sm:$0xff]
    %v49 = vld [vmem:[%s1 + $0x10] sm:$0xff]
    %v50 = vld [vmem:[%s1 + $0x18] sm:$0xff]
    %v51 = vld [vmem:[%s1 + $0x20] sm:$0xff]
    %v52 = vld [vmem:[%s1 + $0x28] sm:$0xff]
    %v53 = vld [vmem:[%s1 + $0x30] sm:$0xff]
    %v54 = vld [vmem:[%s1 + $0x38] sm:$0xff]
    %v55 = vld [vmem:[%s1 + $0x40] sm:$0xff]
    %v56 = vld [vmem:[%s1 + $0x48] sm:$0xff]
    %v57 = vld [vmem:[%s1 + $0x50] sm:$0xff]
    %v58 = vld [vmem:[%s1 + $0x58] sm:$0xff]
    %v59 = vld [vmem:[%s1 + $0x60] sm:$0xff]
    %v60 = vld [vmem:[%s1 + $0x68] sm:$0xff]
    %v61 = vld [vmem:[%s1 + $0x70] sm:$0xff]
    %v62 = vld [vmem:[%s1 + $0x78] sm:$0xff]
    %v63 = vld [vmem:[%s1 + $0x80] sm:$0xff]
    %v64 = vld [vmem:[%s1 + $0x88] sm:$0xff]
    %v65 = vld [vmem:[%s1 + $0x90] sm:$0xff]
    %v66 = vld [vmem:[%s1 + $0x98] sm:$0xff]
    %v67 = vld [vmem:[%s1 + $0xa0] sm:$0xff]
    %v68 = vld [vmem:[%s1 + $0xa8] sm:$0xff]
    %v69 = vld [vmem:[%s1 + $0xb0] sm:$0xff]
    %v70 = vld [vmem:[%s1 + $0xb8] sm:$0xff]
    %v71 = vld [vmem:[%s1 + $0xc0] sm:$0xff]
    %v72 = vld [vmem:[%s1 + $0xc8] sm:$0xff]
    %v73 = vld [vmem:[%s1 + $0xd0] sm:$0xff]
    %v74 = vld [vmem:[%s1 + $0xd8] sm:$0xff]
    %v75 = vld [vmem:[%s1 + $0xe0] sm:$0xff]
    %v76 = vld [vmem:[%s1 + $0xe8] sm:$0xff]
    %v77 = vld [vmem:[%s1 + $0xf0] sm:$0xff]
    %v78 = vld [vmem:[%s1 + $0xf8] sm:$0xff]
    %v79 = vmul.f32 %v15, %v15
    %v80 = vmul.f32 %v16, %v16
    %v81 = vmul.f32 %v17, %v17
    %v82 = vmul.f32 %v18, %v18
    %v83 = vmul.f32 %v19, %v19
    %v84 = vmul.f32 %v20, %v20
    %v85 = vmul.f32 %v21, %v21
    %v86 = vmul.f32 %v22, %v22
    %v87 = vmul.f32 %v23, %v23
    %v88 = vmul.f32 %v24, %v24
    %v89 = vmul.f32 %v25, %v25
    %v90 = vmul.f32 %v26, %v26
    %v91 = vmul.f32 %v27, %v27
    %v92 = vmul.f32 %v28, %v28
    %v93 = vmul.f32 %v29, %v29
    %v94 = vmul.f32 %v30, %v30
    %v95 = vmul.f32 %v31, %v31
    %v96 = vmul.f32 %v32, %v32
    %v97 = vmul.f32 %v33, %v33
    %v98 = vmul.f32 %v34, %v34
    %v99 = vmul.f32 %v35, %v35
    %v100 = vmul.f32 %v36, %v36
    %v101 = vmul.f32 %v37, %v37
    %v102 = vmul.f32 %v38, %v38
    %v103 = vmul.f32 %v39, %v39
    %v104 = vmul.f32 %v40, %v40
    %v105 = vmul.f32 %v41, %v41
    %v106 = vmul.f32 %v42, %v42
    %v107 = vmul.f32 %v43, %v43
    %v108 = vmul.f32 %v44, %v44
    %v109 = vmul.f32 %v45, %v45
    %v110 = vmul.f32 %v46, %v46
    %vm111 = vcmask 261120
    %v112 = vsel %vm111, %v79, 0.0
    %113 = vadd.xlane.f32.xlu0 %v112
    %v114 = vpop.xlane.xlu0 %113
    %v115 = vsel %vm111, %v80, 0.0
    %116 = vadd.xlane.f32.xlu0 %v115
    %v117 = vpop.xlane.xlu0 %116
    %v118 = vsel %vm111, %v81, 0.0
    %119 = vadd.xlane.f32.xlu0 %v118
    %v120 = vpop.xlane.xlu0 %119
    %v121 = vsel %vm111, %v82, 0.0
    %122 = vadd.xlane.f32.xlu0 %v121
    %v123 = vpop.xlane.xlu0 %122
    %v124 = vsel %vm111, %v83, 0.0
    %125 = vadd.xlane.f32.xlu0 %v124
    %v126 = vpop.xlane.xlu0 %125
    %v127 = vsel %vm111, %v84, 0.0
    %128 = vadd.xlane.f32.xlu0 %v127
    %v129 = vpop.xlane.xlu0 %128
    %v130 = vsel %vm111, %v85, 0.0
    %131 = vadd.xlane.f32.xlu0 %v130
    %v132 = vpop.xlane.xlu0 %131
    %v133 = vsel %vm111, %v86, 0.0
    %134 = vadd.xlane.f32.xlu0 %v133
    %v135 = vpop.xlane.xlu0 %134
    %v136 = vsel %vm111, %v87, 0.0
    %137 = vadd.xlane.f32.xlu0 %v136
    %v138 = vpop.xlane.xlu0 %137
    %v139 = vsel %vm111, %v88, 0.0
    %140 = vadd.xlane.f32.xlu0 %v139
    %v141 = vpop.xlane.xlu0 %140
    %v142 = vsel %vm111, %v89, 0.0
    %143 = vadd.xlane.f32.xlu0 %v142
    %v144 = vpop.xlane.xlu0 %143
    %v145 = vsel %vm111, %v90, 0.0
    %146 = vadd.xlane.f32.xlu0 %v145
    %v147 = vpop.xlane.xlu0 %146
    %v148 = vsel %vm111, %v91, 0.0
    %149 = vadd.xlane.f32.xlu0 %v148
    %v150 = vpop.xlane.xlu0 %149
    %v151 = vsel %vm111, %v92, 0.0
    %152 = vadd.xlane.f32.xlu0 %v151
    %v153 = vpop.xlane.xlu0 %152
    %v154 = vsel %vm111, %v93, 0.0
    %155 = vadd.xlane.f32.xlu0 %v154
    %v156 = vpop.xlane.xlu0 %155
    %v157 = vsel %vm111, %v94, 0.0
    %158 = vadd.xlane.f32.xlu0 %v157
    %v159 = vpop.xlane.xlu0 %158
    %v160 = vsel %vm111, %v95, 0.0
    %161 = vadd.xlane.f32.xlu0 %v160
    %v162 = vpop.xlane.xlu0 %161
    %v163 = vsel %vm111, %v96, 0.0
    %164 = vadd.xlane.f32.xlu0 %v163
    %v165 = vpop.xlane.xlu0 %164
    %v166 = vsel %vm111, %v97, 0.0
    %167 = vadd.xlane.f32.xlu0 %v166
    %v168 = vpop.xlane.xlu0 %167
    %v169 = vsel %vm111, %v98, 0.0
    %170 = vadd.xlane.f32.xlu0 %v169
    %v171 = vpop.xlane.xlu0 %170
    %v172 = vsel %vm111, %v99, 0.0
    %173 = vadd.xlane.f32.xlu0 %v172
    %v174 = vpop.xlane.xlu0 %173
    %v175 = vsel %vm111, %v100, 0.0
    %176 = vadd.xlane.f32.xlu0 %v175
    %v177 = vpop.xlane.xlu0 %176
    %v178 = vsel %vm111, %v101, 0.0
    %179 = vadd.xlane.f32.xlu0 %v178
    %v180 = vpop.xlane.xlu0 %179
    %v181 = vsel %vm111, %v102, 0.0
    %182 = vadd.xlane.f32.xlu0 %v181
    %v183 = vpop.xlane.xlu0 %182
    %v184 = vsel %vm111, %v103, 0.0
    %185 = vadd.xlane.f32.xlu0 %v184
    %v186 = vpop.xlane.xlu0 %185
    %v187 = vsel %vm111, %v104, 0.0
    %188 = vadd.xlane.f32.xlu0 %v187
    %v189 = vpop.xlane.xlu0 %188
    %v190 = vsel %vm111, %v105, 0.0
    %191 = vadd.xlane.f32.xlu0 %v190
    %v192 = vpop.xlane.xlu0 %191
    %v193 = vsel %vm111, %v106, 0.0
    %194 = vadd.xlane.f32.xlu0 %v193
    %v195 = vpop.xlane.xlu0 %194
    %v196 = vsel %vm111, %v107, 0.0
    %197 = vadd.xlane.f32.xlu0 %v196
    %v198 = vpop.xlane.xlu0 %197
    %v199 = vsel %vm111, %v108, 0.0
    %200 = vadd.xlane.f32.xlu0 %v199
    %v201 = vpop.xlane.xlu0 %200
    %v202 = vsel %vm111, %v109, 0.0
    %203 = vadd.xlane.f32.xlu0 %v202
    %v204 = vpop.xlane.xlu0 %203
    %v205 = vsel %vm111, %v110, 0.0
    %206 = vadd.xlane.f32.xlu0 %v205
    %v207 = vpop.xlane.xlu0 %206
    %v208 = vmax.f32 %v114, 1e-24
    %v209 = vmax.f32 %v117, 1e-24
    %v210 = vmax.f32 %v120, 1e-24
    %v211 = vmax.f32 %v123, 1e-24
    %v212 = vmax.f32 %v126, 1e-24
    %v213 = vmax.f32 %v129, 1e-24
    %v214 = vmax.f32 %v132, 1e-24
    %v215 = vmax.f32 %v135, 1e-24
    %v216 = vmax.f32 %v138, 1e-24
    %v217 = vmax.f32 %v141, 1e-24
    %v218 = vmax.f32 %v144, 1e-24
    %v219 = vmax.f32 %v147, 1e-24
    %v220 = vmax.f32 %v150, 1e-24
    %v221 = vmax.f32 %v153, 1e-24
    %v222 = vmax.f32 %v156, 1e-24
    %v223 = vmax.f32 %v159, 1e-24
    %v224 = vmax.f32 %v162, 1e-24
    %v225 = vmax.f32 %v165, 1e-24
    %v226 = vmax.f32 %v168, 1e-24
    %v227 = vmax.f32 %v171, 1e-24
    %v228 = vmax.f32 %v174, 1e-24
    %v229 = vmax.f32 %v177, 1e-24
    %v230 = vmax.f32 %v180, 1e-24
    %v231 = vmax.f32 %v183, 1e-24
    %v232 = vmax.f32 %v186, 1e-24
    %v233 = vmax.f32 %v189, 1e-24
    %v234 = vmax.f32 %v192, 1e-24
    %v235 = vmax.f32 %v195, 1e-24
    %v236 = vmax.f32 %v198, 1e-24
    %v237 = vmax.f32 %v201, 1e-24
    %v238 = vmax.f32 %v204, 1e-24
    %v239 = vmax.f32 %v207, 1e-24
    %v240 = vrsqrt.pop %v208
    %v241 = vrsqrt.pop %v209
    %v242 = vrsqrt.pop %v210
    %v243 = vrsqrt.pop %v211
    %v244 = vrsqrt.pop %v212
    %v245 = vrsqrt.pop %v213
    %v246 = vrsqrt.pop %v214
    %v247 = vrsqrt.pop %v215
    %v248 = vrsqrt.pop %v216
    %v249 = vrsqrt.pop %v217
    %v250 = vrsqrt.pop %v218
    %v251 = vrsqrt.pop %v219
    %v252 = vrsqrt.pop %v220
    %v253 = vrsqrt.pop %v221
    %v254 = vrsqrt.pop %v222
    %v255 = vrsqrt.pop %v223
    %v256 = vrsqrt.pop %v224
    %v257 = vrsqrt.pop %v225
    %v258 = vrsqrt.pop %v226
    %v259 = vrsqrt.pop %v227
    %v260 = vrsqrt.pop %v228
    %v261 = vrsqrt.pop %v229
    %v262 = vrsqrt.pop %v230
    %v263 = vrsqrt.pop %v231
    %v264 = vrsqrt.pop %v232
    %v265 = vrsqrt.pop %v233
    %v266 = vrsqrt.pop %v234
    %v267 = vrsqrt.pop %v235
    %v268 = vrsqrt.pop %v236
    %v269 = vrsqrt.pop %v237
    %v270 = vrsqrt.pop %v238
    %v271 = vrsqrt.pop %v239
    %v272 = vmul.f32 %v15, %v240
    %v273 = vmul.f32 %v16, %v241
    %v274 = vmul.f32 %v17, %v242
    %v275 = vmul.f32 %v18, %v243
    %v276 = vmul.f32 %v19, %v244
    %v277 = vmul.f32 %v20, %v245
    %v278 = vmul.f32 %v21, %v246
    %v279 = vmul.f32 %v22, %v247
    %v280 = vmul.f32 %v23, %v248
    %v281 = vmul.f32 %v24, %v249
    %v282 = vmul.f32 %v25, %v250
    %v283 = vmul.f32 %v26, %v251
    %v284 = vmul.f32 %v27, %v252
    %v285 = vmul.f32 %v28, %v253
    %v286 = vmul.f32 %v29, %v254
    %v287 = vmul.f32 %v30, %v255
    %v288 = vmul.f32 %v31, %v256
    %v289 = vmul.f32 %v32, %v257
    %v290 = vmul.f32 %v33, %v258
    %v291 = vmul.f32 %v34, %v259
    %v292 = vmul.f32 %v35, %v260
    %v293 = vmul.f32 %v36, %v261
    %v294 = vmul.f32 %v37, %v262
    %v295 = vmul.f32 %v38, %v263
    %v296 = vmul.f32 %v39, %v264
    %v297 = vmul.f32 %v40, %v265
    %v298 = vmul.f32 %v41, %v266
    %v299 = vmul.f32 %v42, %v267
    %v300 = vmul.f32 %v43, %v268
    %v301 = vmul.f32 %v44, %v269
    %v302 = vmul.f32 %v45, %v270
    %v303 = vmul.f32 %v46, %v271
    %v305 = vsel %vm111, %v47, 0
    %v308 = vsel %vm111, %v48, 0
    %v311 = vsel %vm111, %v49, 0
    %v314 = vsel %vm111, %v50, 0
    %v317 = vsel %vm111, %v51, 0
    %v320 = vsel %vm111, %v52, 0
    %v323 = vsel %vm111, %v53, 0
    %v326 = vsel %vm111, %v54, 0
    %v329 = vsel %vm111, %v55, 0
    %v332 = vsel %vm111, %v56, 0
    %v335 = vsel %vm111, %v57, 0
    %v338 = vsel %vm111, %v58, 0
    %v341 = vsel %vm111, %v59, 0
    %v344 = vsel %vm111, %v60, 0
    %v347 = vsel %vm111, %v61, 0
    %v350 = vsel %vm111, %v62, 0
    %v353 = vsel %vm111, %v63, 0
    %v356 = vsel %vm111, %v64, 0
    %v359 = vsel %vm111, %v65, 0
    %v362 = vsel %vm111, %v66, 0
    %v365 = vsel %vm111, %v67, 0
    %v368 = vsel %vm111, %v68, 0
    %v371 = vsel %vm111, %v69, 0
    %v374 = vsel %vm111, %v70, 0
    %v377 = vsel %vm111, %v71, 0
    %v380 = vsel %vm111, %v72, 0
    %v383 = vsel %vm111, %v73, 0
    %v386 = vsel %vm111, %v74, 0
    %v389 = vsel %vm111, %v75, 0
    %v392 = vsel %vm111, %v76, 0
    %v395 = vsel %vm111, %v77, 0
    %v398 = vsel %vm111, %v78, 0
    %v401 = vsel %vm111, %v272, 0
    %v404 = vsel %vm111, %v273, 0
    %v407 = vsel %vm111, %v274, 0
    %v410 = vsel %vm111, %v275, 0
    %v413 = vsel %vm111, %v276, 0
    %v416 = vsel %vm111, %v277, 0
    %v419 = vsel %vm111, %v278, 0
    %v422 = vsel %vm111, %v279, 0
    %v425 = vsel %vm111, %v280, 0
    %v428 = vsel %vm111, %v281, 0
    %v431 = vsel %vm111, %v282, 0
    %v434 = vsel %vm111, %v283, 0
    %v437 = vsel %vm111, %v284, 0
    %v440 = vsel %vm111, %v285, 0
    %v443 = vsel %vm111, %v286, 0
    %v446 = vsel %vm111, %v287, 0
    %v449 = vsel %vm111, %v288, 0
    %v452 = vsel %vm111, %v289, 0
    %v455 = vsel %vm111, %v290, 0
    %v458 = vsel %vm111, %v291, 0
    %v461 = vsel %vm111, %v292, 0
    %v464 = vsel %vm111, %v293, 0
    %v467 = vsel %vm111, %v294, 0
    %v470 = vsel %vm111, %v295, 0
    %v473 = vsel %vm111, %v296, 0
    %v476 = vsel %vm111, %v297, 0
    %v479 = vsel %vm111, %v298, 0
    %v482 = vsel %vm111, %v299, 0
    %v485 = vsel %vm111, %v300, 0
    %v488 = vsel %vm111, %v301, 0
    %v491 = vsel %vm111, %v302, 0
    %v494 = vsel %vm111, %v303, 0
    %496 = vmatprep.subr.mxu0 0.0
    %497 = vmatpush1.xpose.msra.mxu0 %v446
    %498 = vmatprep.subr.mxu0 0.0
    %499 = vmatpush1.xpose.msra.mxu0 %v443
    %500 = vmatprep.subr.mxu0 0.0
    %501 = vmatpush1.xpose.msra.mxu0 %v440
    %502 = vmatprep.subr.mxu0 0.0
    %503 = vmatpush1.xpose.msra.mxu0 %v437
    %504 = vmatprep.subr.mxu0 0.0
    %505 = vmatpush1.xpose.msra.mxu0 %v434
    %506 = vmatprep.subr.mxu0 0.0
    %507 = vmatpush1.xpose.msra.mxu0 %v431
    %508 = vmatprep.subr.mxu0 0.0
    %509 = vmatpush1.xpose.msra.mxu0 %v428
    %510 = vmatprep.subr.mxu0 0.0
    %511 = vmatpush1.xpose.msra.mxu0 %v425
    %512 = vmatprep.subr.mxu0 0.0
    %513 = vmatpush1.xpose.msra.mxu0 %v422
    %514 = vmatprep.subr.mxu0 0.0
    %515 = vmatpush1.xpose.msra.mxu0 %v419
    %516 = vmatprep.subr.mxu0 0.0
    %517 = vmatpush1.xpose.msra.mxu0 %v416
    %518 = vmatprep.subr.mxu0 0.0
    %519 = vmatpush1.xpose.msra.mxu0 %v413
    %520 = vmatprep.subr.mxu0 0.0
    %521 = vmatpush1.xpose.msra.mxu0 %v410
    %522 = vmatprep.subr.mxu0 0.0
    %523 = vmatpush1.xpose.msra.mxu0 %v407
    %524 = vmatprep.subr.mxu0 0.0
    %525 = vmatpush1.xpose.msra.mxu0 %v404
    %526 = vmatprep.subr.mxu0 0.0
    %527 = vmatpush1.xpose.msra.mxu0 %v401
    %528 = vmatprep.subr.mxu0 0.0
    %529 = vmatpush2.xpose.msra.mxu0 %v494
    %530 = vmatprep.subr.mxu0 0.0
    %531 = vmatpush2.xpose.msra.mxu0 %v491
    %532 = vmatprep.subr.mxu0 0.0
    %533 = vmatpush2.xpose.msra.mxu0 %v488
    %534 = vmatprep.subr.mxu0 0.0
    %535 = vmatpush2.xpose.msra.mxu0 %v485
    %536 = vmatprep.subr.mxu0 0.0
    %537 = vmatpush2.xpose.msra.mxu0 %v482
    %538 = vmatprep.subr.mxu0 0.0
    %539 = vmatpush2.xpose.msra.mxu0 %v479
    %540 = vmatprep.subr.mxu0 0.0
    %541 = vmatpush2.xpose.msra.mxu0 %v476
    %542 = vmatprep.subr.mxu0 0.0
    %543 = vmatpush2.xpose.msra.mxu0 %v473
    %544 = vmatprep.subr.mxu0 0.0
    %545 = vmatpush2.xpose.msra.mxu0 %v470
    %546 = vmatprep.subr.mxu0 0.0
    %547 = vmatpush2.xpose.msra.mxu0 %v467
    %548 = vmatprep.subr.mxu0 0.0
    %549 = vmatpush2.xpose.msra.mxu0 %v464
    %550 = vmatprep.subr.mxu0 0.0
    %551 = vmatpush2.xpose.msra.mxu0 %v461
    %552 = vmatprep.subr.mxu0 0.0
    %553 = vmatpush2.xpose.msra.mxu0 %v458
    %554 = vmatprep.subr.mxu0 0.0
    %555 = vmatpush2.xpose.msra.mxu0 %v455
    %556 = vmatprep.subr.mxu0 0.0
    %557 = vmatpush2.xpose.msra.mxu0 %v452
    %558 = vmatprep.subr.mxu0 0.0
    %559 = vmatpush2.xpose.msra.mxu0 %v449
    %560 = vmatprep.mubr.f32.mxu0 0.0
    %561 = vmatmul.mubr.f32.gmra.mxu0 %v305
    %v562 = vpop.f32.mrf.mxu0
    %v563 = vadd.f32 0.0, %v562
    %v564 = vpop.f32.mrf.mxu0
    %v565 = vadd.f32 0.0, %v564
    %566 = vmatprep.mubr.f32.mxu0 0.0
    %567 = vmatmul.mubr.f32.gmra.mxu0 %v308
    %v568 = vpop.f32.mrf.mxu0
    %v569 = vadd.f32 0.0, %v568
    %v570 = vpop.f32.mrf.mxu0
    %v571 = vadd.f32 0.0, %v570
    %572 = vmatprep.mubr.f32.mxu0 0.0
    %573 = vmatmul.mubr.f32.gmra.mxu0 %v311
    %v574 = vpop.f32.mrf.mxu0
    %v575 = vadd.f32 0.0, %v574
    %v576 = vpop.f32.mrf.mxu0
    %v577 = vadd.f32 0.0, %v576
    %578 = vmatprep.mubr.f32.mxu0 0.0
    %579 = vmatmul.mubr.f32.gmra.mxu0 %v314
    %v580 = vpop.f32.mrf.mxu0
    %v581 = vadd.f32 0.0, %v580
    %v582 = vpop.f32.mrf.mxu0
    %v583 = vadd.f32 0.0, %v582
    %584 = vmatprep.mubr.f32.mxu0 0.0
    %585 = vmatmul.mubr.f32.gmra.mxu0 %v317
    %v586 = vpop.f32.mrf.mxu0
    %v587 = vadd.f32 0.0, %v586
    %v588 = vpop.f32.mrf.mxu0
    %v589 = vadd.f32 0.0, %v588
    %590 = vmatprep.mubr.f32.mxu0 0.0
    %591 = vmatmul.mubr.f32.gmra.mxu0 %v320
    %v592 = vpop.f32.mrf.mxu0
    %v593 = vadd.f32 0.0, %v592
    %v594 = vpop.f32.mrf.mxu0
    %v595 = vadd.f32 0.0, %v594
    %596 = vmatprep.mubr.f32.mxu0 0.0
    %597 = vmatmul.mubr.f32.gmra.mxu0 %v323
    %v598 = vpop.f32.mrf.mxu0
    %v599 = vadd.f32 0.0, %v598
    %v600 = vpop.f32.mrf.mxu0
    %v601 = vadd.f32 0.0, %v600
    %602 = vmatprep.mubr.f32.mxu0 0.0
    %603 = vmatmul.mubr.f32.gmra.mxu0 %v326
    %v604 = vpop.f32.mrf.mxu0
    %v605 = vadd.f32 0.0, %v604
    %v606 = vpop.f32.mrf.mxu0
    %v607 = vadd.f32 0.0, %v606
    %608 = vmatprep.mubr.f32.mxu0 0.0
    %609 = vmatmul.mubr.f32.gmra.mxu0 %v329
    %v610 = vpop.f32.mrf.mxu0
    %v611 = vadd.f32 0.0, %v610
    %v612 = vpop.f32.mrf.mxu0
    %v613 = vadd.f32 0.0, %v612
    %614 = vmatprep.mubr.f32.mxu0 0.0
    %615 = vmatmul.mubr.f32.gmra.mxu0 %v332
    %v616 = vpop.f32.mrf.mxu0
    %v617 = vadd.f32 0.0, %v616
    %v618 = vpop.f32.mrf.mxu0
    %v619 = vadd.f32 0.0, %v618
    %620 = vmatprep.mubr.f32.mxu0 0.0
    %621 = vmatmul.mubr.f32.gmra.mxu0 %v335
    %v622 = vpop.f32.mrf.mxu0
    %v623 = vadd.f32 0.0, %v622
    %v624 = vpop.f32.mrf.mxu0
    %v625 = vadd.f32 0.0, %v624
    %626 = vmatprep.mubr.f32.mxu0 0.0
    %627 = vmatmul.mubr.f32.gmra.mxu0 %v338
    %v628 = vpop.f32.mrf.mxu0
    %v629 = vadd.f32 0.0, %v628
    %v630 = vpop.f32.mrf.mxu0
    %v631 = vadd.f32 0.0, %v630
    %632 = vmatprep.mubr.f32.mxu0 0.0
    %633 = vmatmul.mubr.f32.gmra.mxu0 %v341
    %v634 = vpop.f32.mrf.mxu0
    %v635 = vadd.f32 0.0, %v634
    %v636 = vpop.f32.mrf.mxu0
    %v637 = vadd.f32 0.0, %v636
    %638 = vmatprep.mubr.f32.mxu0 0.0
    %639 = vmatmul.mubr.f32.gmra.mxu0 %v344
    %v640 = vpop.f32.mrf.mxu0
    %v641 = vadd.f32 0.0, %v640
    %v642 = vpop.f32.mrf.mxu0
    %v643 = vadd.f32 0.0, %v642
    %644 = vmatprep.mubr.f32.mxu0 0.0
    %645 = vmatmul.mubr.f32.gmra.mxu0 %v347
    %v646 = vpop.f32.mrf.mxu0
    %v647 = vadd.f32 0.0, %v646
    %v648 = vpop.f32.mrf.mxu0
    %v649 = vadd.f32 0.0, %v648
    %650 = vmatprep.mubr.f32.mxu0 0.0
    %651 = vmatmul.mubr.f32.gmra.mxu0 %v350
    %v652 = vpop.f32.mrf.mxu0
    %v653 = vadd.f32 0.0, %v652
    %v654 = vpop.f32.mrf.mxu0
    %v655 = vadd.f32 0.0, %v654
    %656 = vmatprep.mubr.f32.mxu0 0.0
    %657 = vmatmul.mubr.f32.gmra.mxu0 %v353
    %v658 = vpop.f32.mrf.mxu0
    %v659 = vadd.f32 0.0, %v658
    %v660 = vpop.f32.mrf.mxu0
    %v661 = vadd.f32 0.0, %v660
    %662 = vmatprep.mubr.f32.mxu0 0.0
    %663 = vmatmul.mubr.f32.gmra.mxu0 %v356
    %v664 = vpop.f32.mrf.mxu0
    %v665 = vadd.f32 0.0, %v664
    %v666 = vpop.f32.mrf.mxu0
    %v667 = vadd.f32 0.0, %v666
    %668 = vmatprep.mubr.f32.mxu0 0.0
    %669 = vmatmul.mubr.f32.gmra.mxu0 %v359
    %v670 = vpop.f32.mrf.mxu0
    %v671 = vadd.f32 0.0, %v670
    %v672 = vpop.f32.mrf.mxu0
    %v673 = vadd.f32 0.0, %v672
    %674 = vmatprep.mubr.f32.mxu0 0.0
    %675 = vmatmul.mubr.f32.gmra.mxu0 %v362
    %v676 = vpop.f32.mrf.mxu0
    %v677 = vadd.f32 0.0, %v676
    %v678 = vpop.f32.mrf.mxu0
    %v679 = vadd.f32 0.0, %v678
    %680 = vmatprep.mubr.f32.mxu0 0.0
    %681 = vmatmul.mubr.f32.gmra.mxu0 %v365
    %v682 = vpop.f32.mrf.mxu0
    %v683 = vadd.f32 0.0, %v682
    %v684 = vpop.f32.mrf.mxu0
    %v685 = vadd.f32 0.0, %v684
    %686 = vmatprep.mubr.f32.mxu0 0.0
    %687 = vmatmul.mubr.f32.gmra.mxu0 %v368
    %v688 = vpop.f32.mrf.mxu0
    %v689 = vadd.f32 0.0, %v688
    %v690 = vpop.f32.mrf.mxu0
    %v691 = vadd.f32 0.0, %v690
    %692 = vmatprep.mubr.f32.mxu0 0.0
    %693 = vmatmul.mubr.f32.gmra.mxu0 %v371
    %v694 = vpop.f32.mrf.mxu0
    %v695 = vadd.f32 0.0, %v694
    %v696 = vpop.f32.mrf.mxu0
    %v697 = vadd.f32 0.0, %v696
    %698 = vmatprep.mubr.f32.mxu0 0.0
    %699 = vmatmul.mubr.f32.gmra.mxu0 %v374
    %v700 = vpop.f32.mrf.mxu0
    %v701 = vadd.f32 0.0, %v700
    %v702 = vpop.f32.mrf.mxu0
    %v703 = vadd.f32 0.0, %v702
    %704 = vmatprep.mubr.f32.mxu0 0.0
    %705 = vmatmul.mubr.f32.gmra.mxu0 %v377
    %v706 = vpop.f32.mrf.mxu0
    %v707 = vadd.f32 0.0, %v706
    %v708 = vpop.f32.mrf.mxu0
    %v709 = vadd.f32 0.0, %v708
    %710 = vmatprep.mubr.f32.mxu0 0.0
    %711 = vmatmul.mubr.f32.gmra.mxu0 %v380
    %v712 = vpop.f32.mrf.mxu0
    %v713 = vadd.f32 0.0, %v712
    %v714 = vpop.f32.mrf.mxu0
    %v715 = vadd.f32 0.0, %v714
    %716 = vmatprep.mubr.f32.mxu0 0.0
    %717 = vmatmul.mubr.f32.gmra.mxu0 %v383
    %v718 = vpop.f32.mrf.mxu0
    %v719 = vadd.f32 0.0, %v718
    %v720 = vpop.f32.mrf.mxu0
    %v721 = vadd.f32 0.0, %v720
    %722 = vmatprep.mubr.f32.mxu0 0.0
    %723 = vmatmul.mubr.f32.gmra.mxu0 %v386
    %v724 = vpop.f32.mrf.mxu0
    %v725 = vadd.f32 0.0, %v724
    %v726 = vpop.f32.mrf.mxu0
    %v727 = vadd.f32 0.0, %v726
    %728 = vmatprep.mubr.f32.mxu0 0.0
    %729 = vmatmul.mubr.f32.gmra.mxu0 %v389
    %v730 = vpop.f32.mrf.mxu0
    %v731 = vadd.f32 0.0, %v730
    %v732 = vpop.f32.mrf.mxu0
    %v733 = vadd.f32 0.0, %v732
    %734 = vmatprep.mubr.f32.mxu0 0.0
    %735 = vmatmul.mubr.f32.gmra.mxu0 %v392
    %v736 = vpop.f32.mrf.mxu0
    %v737 = vadd.f32 0.0, %v736
    %v738 = vpop.f32.mrf.mxu0
    %v739 = vadd.f32 0.0, %v738
    %740 = vmatprep.mubr.f32.mxu0 0.0
    %741 = vmatmul.mubr.f32.gmra.mxu0 %v395
    %v742 = vpop.f32.mrf.mxu0
    %v743 = vadd.f32 0.0, %v742
    %v744 = vpop.f32.mrf.mxu0
    %v745 = vadd.f32 0.0, %v744
    %746 = vmatprep.mubr.f32.mxu0 0.0
    %747 = vmatmul.mubr.f32.gmra.mxu0 %v398
    %v748 = vpop.f32.mrf.mxu0
    %v749 = vadd.f32 0.0, %v748
    %v750 = vpop.f32.mrf.mxu0
    %v751 = vadd.f32 0.0, %v750
    %752 = vdwg.mxu0
    %v753 = vlaneseq
    %v754 = vshrl.u32 %v753, 7
    %v755 = vadd.s32 %v754, 8
    %v756 = vadd.s32 %v754, 16
    %v757 = vadd.s32 %v754, 24
    %v758 = vadd.s32 %v754, 32
    %v759 = vadd.s32 %v754, 40
    %v760 = vadd.s32 %v754, 48
    %v761 = vadd.s32 %v754, 56
    %v762 = vadd.s32 %v754, 64
    %v763 = vadd.s32 %v754, 72
    %v764 = vadd.s32 %v754, 80
    %v765 = vadd.s32 %v754, 88
    %v766 = vadd.s32 %v754, 96
    %v767 = vadd.s32 %v754, 104
    %v768 = vadd.s32 %v754, 112
    %v769 = vadd.s32 %v754, 120
    %v770 = vadd.s32 %v754, 128
    %v771 = vadd.s32 %v754, 136
    %v772 = vadd.s32 %v754, 144
    %v773 = vadd.s32 %v754, 152
    %v774 = vadd.s32 %v754, 160
    %v775 = vadd.s32 %v754, 168
    %v776 = vadd.s32 %v754, 176
    %v777 = vadd.s32 %v754, 184
    %v778 = vadd.s32 %v754, 192
    %v779 = vadd.s32 %v754, 200
    %v780 = vadd.s32 %v754, 208
    %v781 = vadd.s32 %v754, 216
    %v782 = vadd.s32 %v754, 224
    %v783 = vadd.s32 %v754, 232
    %v784 = vadd.s32 %v754, 240
    %v785 = vadd.s32 %v754, 248
    %v786 = vmax.f32 %v563, %v575
    %v787 = vmax.f32 %v569, %v581
    %v788 = vmax.f32 %v786, %v587
    %v789 = vmax.f32 %v787, %v593
    %v790 = vmax.f32 %v788, %v599
    %v791 = vmax.f32 %v789, %v605
    %v792 = vmax.f32 %v790, %v611
    %v793 = vmax.f32 %v791, %v617
    %v794 = vmax.f32 %v792, %v623
    %v795 = vmax.f32 %v793, %v629
    %v796 = vmax.f32 %v794, %v635
    %v797 = vmax.f32 %v795, %v641
    %v798 = vmax.f32 %v796, %v647
    %v799 = vmax.f32 %v797, %v653
    %v800 = vmax.f32 %v798, %v659
    %v801 = vmax.f32 %v799, %v665
    %v802 = vmax.f32 %v800, %v671
    %v803 = vmax.f32 %v801, %v677
    %v804 = vmax.f32 %v802, %v683
    %v805 = vmax.f32 %v803, %v689
    %v806 = vmax.f32 %v804, %v695
    %v807 = vmax.f32 %v805, %v701
    %v808 = vmax.f32 %v806, %v707
    %v809 = vmax.f32 %v807, %v713
    %v810 = vmax.f32 %v808, %v719
    %v811 = vmax.f32 %v809, %v725
    %v812 = vmax.f32 %v810, %v731
    %v813 = vmax.f32 %v811, %v737
    %v814 = vmax.f32 %v812, %v743
    %v815 = vmax.f32 %v813, %v749
    %v816 = vmax.f32 %v814, %v815
    %v817 = vrot.slane %v816, 4
    %v818 = vmax.f32 %v816, %v817
    %v819 = vrot.slane %v818, 2
    %v820 = vmax.f32 %v818, %v819
    %v821 = vrot.slane %v820, 1
    %v822 = vmax.f32 %v820, %v821
    %v823 = vmax.f32 %v565, %v577
    %v824 = vmax.f32 %v571, %v583
    %v825 = vmax.f32 %v823, %v589
    %v826 = vmax.f32 %v824, %v595
    %v827 = vmax.f32 %v825, %v601
    %v828 = vmax.f32 %v826, %v607
    %v829 = vmax.f32 %v827, %v613
    %v830 = vmax.f32 %v828, %v619
    %v831 = vmax.f32 %v829, %v625
    %v832 = vmax.f32 %v830, %v631
    %v833 = vmax.f32 %v831, %v637
    %v834 = vmax.f32 %v832, %v643
    %v835 = vmax.f32 %v833, %v649
    %v836 = vmax.f32 %v834, %v655
    %v837 = vmax.f32 %v835, %v661
    %v838 = vmax.f32 %v836, %v667
    %v839 = vmax.f32 %v837, %v673
    %v840 = vmax.f32 %v838, %v679
    %v841 = vmax.f32 %v839, %v685
    %v842 = vmax.f32 %v840, %v691
    %v843 = vmax.f32 %v841, %v697
    %v844 = vmax.f32 %v842, %v703
    %v845 = vmax.f32 %v843, %v709
    %v846 = vmax.f32 %v844, %v715
    %v847 = vmax.f32 %v845, %v721
    %v848 = vmax.f32 %v846, %v727
    %v849 = vmax.f32 %v847, %v733
    %v850 = vmax.f32 %v848, %v739
    %v851 = vmax.f32 %v849, %v745
    %v852 = vmax.f32 %v850, %v751
    %v853 = vmax.f32 %v851, %v852
    %v854 = vrot.slane %v853, 4
    %v855 = vmax.f32 %v853, %v854
    %v856 = vrot.slane %v855, 2
    %v857 = vmax.f32 %v855, %v856
    %v858 = vrot.slane %v857, 1
    %v859 = vmax.f32 %v857, %v858
    %vm860 = vcmp.eq.f32.partialorder %v563, %v822
    %vm861 = vcmp.eq.f32.partialorder %v565, %v859
    %vm862 = vcmp.eq.f32.partialorder %v569, %v822
    %vm863 = vcmp.eq.f32.partialorder %v571, %v859
    %vm864 = vcmp.eq.f32.partialorder %v575, %v822
    %vm865 = vcmp.eq.f32.partialorder %v577, %v859
    %vm866 = vcmp.eq.f32.partialorder %v581, %v822
    %vm867 = vcmp.eq.f32.partialorder %v583, %v859
    %vm868 = vcmp.eq.f32.partialorder %v587, %v822
    %vm869 = vcmp.eq.f32.partialorder %v589, %v859
    %vm870 = vcmp.eq.f32.partialorder %v593, %v822
    %vm871 = vcmp.eq.f32.partialorder %v595, %v859
    %vm872 = vcmp.eq.f32.partialorder %v599, %v822
    %vm873 = vcmp.eq.f32.partialorder %v601, %v859
    %vm874 = vcmp.eq.f32.partialorder %v605, %v822
    %vm875 = vcmp.eq.f32.partialorder %v607, %v859
    %vm876 = vcmp.eq.f32.partialorder %v611, %v822
    %vm877 = vcmp.eq.f32.partialorder %v613, %v859
    %vm878 = vcmp.eq.f32.partialorder %v617, %v822
    %vm879 = vcmp.eq.f32.partialorder %v619, %v859
    %vm880 = vcmp.eq.f32.partialorder %v623, %v822
    %vm881 = vcmp.eq.f32.partialorder %v625, %v859
    %vm882 = vcmp.eq.f32.partialorder %v629, %v822
    %vm883 = vcmp.eq.f32.partialorder %v631, %v859
    %vm884 = vcmp.eq.f32.partialorder %v635, %v822
    %vm885 = vcmp.eq.f32.partialorder %v637, %v859
    %vm886 = vcmp.eq.f32.partialorder %v641, %v822
    %vm887 = vcmp.eq.f32.partialorder %v643, %v859
    %vm888 = vcmp.eq.f32.partialorder %v647, %v822
    %vm889 = vcmp.eq.f32.partialorder %v649, %v859
    %vm890 = vcmp.eq.f32.partialorder %v653, %v822
    %vm891 = vcmp.eq.f32.partialorder %v655, %v859
    %vm892 = vcmp.eq.f32.partialorder %v659, %v822
    %vm893 = vcmp.eq.f32.partialorder %v661, %v859
    %vm894 = vcmp.eq.f32.partialorder %v665, %v822
    %vm895 = vcmp.eq.f32.partialorder %v667, %v859
    %vm896 = vcmp.eq.f32.partialorder %v671, %v822
    %vm897 = vcmp.eq.f32.partialorder %v673, %v859
    %vm898 = vcmp.eq.f32.partialorder %v677, %v822
    %vm899 = vcmp.eq.f32.partialorder %v679, %v859
    %vm900 = vcmp.eq.f32.partialorder %v683, %v822
    %vm901 = vcmp.eq.f32.partialorder %v685, %v859
    %vm902 = vcmp.eq.f32.partialorder %v689, %v822
    %vm903 = vcmp.eq.f32.partialorder %v691, %v859
    %vm904 = vcmp.eq.f32.partialorder %v695, %v822
    %vm905 = vcmp.eq.f32.partialorder %v697, %v859
    %vm906 = vcmp.eq.f32.partialorder %v701, %v822
    %vm907 = vcmp.eq.f32.partialorder %v703, %v859
    %vm908 = vcmp.eq.f32.partialorder %v707, %v822
    %vm909 = vcmp.eq.f32.partialorder %v709, %v859
    %vm910 = vcmp.eq.f32.partialorder %v713, %v822
    %vm911 = vcmp.eq.f32.partialorder %v715, %v859
    %vm912 = vcmp.eq.f32.partialorder %v719, %v822
    %vm913 = vcmp.eq.f32.partialorder %v721, %v859
    %vm914 = vcmp.eq.f32.partialorder %v725, %v822
    %vm915 = vcmp.eq.f32.partialorder %v727, %v859
    %vm916 = vcmp.eq.f32.partialorder %v731, %v822
    %vm917 = vcmp.eq.f32.partialorder %v733, %v859
    %vm918 = vcmp.eq.f32.partialorder %v737, %v822
    %vm919 = vcmp.eq.f32.partialorder %v739, %v859
    %vm920 = vcmp.eq.f32.partialorder %v743, %v822
    %vm921 = vcmp.eq.f32.partialorder %v745, %v859
    %vm922 = vcmp.eq.f32.partialorder %v749, %v822
    %vm923 = vcmp.eq.f32.partialorder %v751, %v859
    %v924 = vsel %vm860, %v754, 256
    %v925 = vsel %vm861, %v754, 256
    %v926 = vsel %vm862, %v755, 256
    %v927 = vsel %vm863, %v755, 256
    %v928 = vsel %vm864, %v756, 256
    %v929 = vsel %vm865, %v756, 256
    %v930 = vsel %vm866, %v757, 256
    %v931 = vsel %vm867, %v757, 256
    %v932 = vsel %vm868, %v758, 256
    %v933 = vsel %vm869, %v758, 256
    %v934 = vsel %vm870, %v759, 256
    %v935 = vsel %vm871, %v759, 256
    %v936 = vsel %vm872, %v760, 256
    %v937 = vsel %vm873, %v760, 256
    %v938 = vsel %vm874, %v761, 256
    %v939 = vsel %vm875, %v761, 256
    %v940 = vsel %vm876, %v762, 256
    %v941 = vsel %vm877, %v762, 256
    %v942 = vsel %vm878, %v763, 256
    %v943 = vsel %vm879, %v763, 256
    %v944 = vsel %vm880, %v764, 256
    %v945 = vsel %vm881, %v764, 256
    %v946 = vsel %vm882, %v765, 256
    %v947 = vsel %vm883, %v765, 256
    %v948 = vsel %vm884, %v766, 256
    %v949 = vsel %vm885, %v766, 256
    %v950 = vsel %vm886, %v767, 256
    %v951 = vsel %vm887, %v767, 256
    %v952 = vsel %vm888, %v768, 256
    %v953 = vsel %vm889, %v768, 256
    %v954 = vsel %vm890, %v769, 256
    %v955 = vsel %vm891, %v769, 256
    %v956 = vsel %vm892, %v770, 256
    %v957 = vsel %vm893, %v770, 256
    %v958 = vsel %vm894, %v771, 256
    %v959 = vsel %vm895, %v771, 256
    %v960 = vsel %vm896, %v772, 256
    %v961 = vsel %vm897, %v772, 256
    %v962 = vsel %vm898, %v773, 256
    %v963 = vsel %vm899, %v773, 256
    %v964 = vsel %vm900, %v774, 256
    %v965 = vsel %vm901, %v774, 256
    %v966 = vsel %vm902, %v775, 256
    %v967 = vsel %vm903, %v775, 256
    %v968 = vsel %vm904, %v776, 256
    %v969 = vsel %vm905, %v776, 256
    %v970 = vsel %vm906, %v777, 256
    %v971 = vsel %vm907, %v777, 256
    %v972 = vsel %vm908, %v778, 256
    %v973 = vsel %vm909, %v778, 256
    %v974 = vsel %vm910, %v779, 256
    %v975 = vsel %vm911, %v779, 256
    %v976 = vsel %vm912, %v780, 256
    %v977 = vsel %vm913, %v780, 256
    %v978 = vsel %vm914, %v781, 256
    %v979 = vsel %vm915, %v781, 256
    %v980 = vsel %vm916, %v782, 256
    %v981 = vsel %vm917, %v782, 256
    %v982 = vsel %vm918, %v783, 256
    %v983 = vsel %vm919, %v783, 256
    %v984 = vsel %vm920, %v784, 256
    %v985 = vsel %vm921, %v784, 256
    %v986 = vsel %vm922, %v785, 256
    %v987 = vsel %vm923, %v785, 256
    %vm988 = vcmp.lt.s32.totalorder %v924, %v928
    %v989 = vsel %vm988, %v924, %v928
    %vm990 = vcmp.lt.s32.totalorder %v926, %v930
    %v991 = vsel %vm990, %v926, %v930
    %vm992 = vcmp.lt.s32.totalorder %v989, %v932
    %v993 = vsel %vm992, %v989, %v932
    %vm994 = vcmp.lt.s32.totalorder %v991, %v934
    %v995 = vsel %vm994, %v991, %v934
    %vm996 = vcmp.lt.s32.totalorder %v993, %v936
    %v997 = vsel %vm996, %v993, %v936
    %vm998 = vcmp.lt.s32.totalorder %v995, %v938
    %v999 = vsel %vm998, %v995, %v938
    %vm1000 = vcmp.lt.s32.totalorder %v997, %v940
    %v1001 = vsel %vm1000, %v997, %v940
    %vm1002 = vcmp.lt.s32.totalorder %v999, %v942
    %v1003 = vsel %vm1002, %v999, %v942
    %vm1004 = vcmp.lt.s32.totalorder %v1001, %v944
    %v1005 = vsel %vm1004, %v1001, %v944
    %vm1006 = vcmp.lt.s32.totalorder %v1003, %v946
    %v1007 = vsel %vm1006, %v1003, %v946
    %vm1008 = vcmp.lt.s32.totalorder %v1005, %v948
    %v1009 = vsel %vm1008, %v1005, %v948
    %vm1010 = vcmp.lt.s32.totalorder %v1007, %v950
    %v1011 = vsel %vm1010, %v1007, %v950
    %vm1012 = vcmp.lt.s32.totalorder %v1009, %v952
    %v1013 = vsel %vm1012, %v1009, %v952
    %vm1014 = vcmp.lt.s32.totalorder %v1011, %v954
    %v1015 = vsel %vm1014, %v1011, %v954
    %vm1016 = vcmp.lt.s32.totalorder %v1013, %v956
    %v1017 = vsel %vm1016, %v1013, %v956
    %vm1018 = vcmp.lt.s32.totalorder %v1015, %v958
    %v1019 = vsel %vm1018, %v1015, %v958
    %vm1020 = vcmp.lt.s32.totalorder %v1017, %v960
    %v1021 = vsel %vm1020, %v1017, %v960
    %vm1022 = vcmp.lt.s32.totalorder %v1019, %v962
    %v1023 = vsel %vm1022, %v1019, %v962
    %vm1024 = vcmp.lt.s32.totalorder %v1021, %v964
    %v1025 = vsel %vm1024, %v1021, %v964
    %vm1026 = vcmp.lt.s32.totalorder %v1023, %v966
    %v1027 = vsel %vm1026, %v1023, %v966
    %vm1028 = vcmp.lt.s32.totalorder %v1025, %v968
    %v1029 = vsel %vm1028, %v1025, %v968
    %vm1030 = vcmp.lt.s32.totalorder %v1027, %v970
    %v1031 = vsel %vm1030, %v1027, %v970
    %vm1032 = vcmp.lt.s32.totalorder %v1029, %v972
    %v1033 = vsel %vm1032, %v1029, %v972
    %vm1034 = vcmp.lt.s32.totalorder %v1031, %v974
    %v1035 = vsel %vm1034, %v1031, %v974
    %vm1036 = vcmp.lt.s32.totalorder %v1033, %v976
    %v1037 = vsel %vm1036, %v1033, %v976
    %vm1038 = vcmp.lt.s32.totalorder %v1035, %v978
    %v1039 = vsel %vm1038, %v1035, %v978
    %vm1040 = vcmp.lt.s32.totalorder %v1037, %v980
    %v1041 = vsel %vm1040, %v1037, %v980
    %vm1042 = vcmp.lt.s32.totalorder %v1039, %v982
    %v1043 = vsel %vm1042, %v1039, %v982
    %vm1044 = vcmp.lt.s32.totalorder %v1041, %v984
    %v1045 = vsel %vm1044, %v1041, %v984
    %vm1046 = vcmp.lt.s32.totalorder %v1043, %v986
    %v1047 = vsel %vm1046, %v1043, %v986
    %vm1048 = vcmp.lt.s32.totalorder %v1045, %v1047
    %v1049 = vsel %vm1048, %v1045, %v1047
    %v1050 = vrot.slane %v1049, 4
    %vm1051 = vcmp.lt.s32.totalorder %v1049, %v1050
    %v1052 = vsel %vm1051, %v1049, %v1050
    %v1053 = vrot.slane %v1052, 2
    %vm1054 = vcmp.lt.s32.totalorder %v1052, %v1053
    %v1055 = vsel %vm1054, %v1052, %v1053
    %v1056 = vrot.slane %v1055, 1
    %vm1057 = vcmp.lt.s32.totalorder %v1055, %v1056
    %v1058 = vsel %vm1057, %v1055, %v1056
    %vm1059 = vcmp.lt.s32.totalorder %v925, %v929
    %v1060 = vsel %vm1059, %v925, %v929
    %vm1061 = vcmp.lt.s32.totalorder %v927, %v931
    %v1062 = vsel %vm1061, %v927, %v931
    %vm1063 = vcmp.lt.s32.totalorder %v1060, %v933
    %v1064 = vsel %vm1063, %v1060, %v933
    %vm1065 = vcmp.lt.s32.totalorder %v1062, %v935
    %v1066 = vsel %vm1065, %v1062, %v935
    %vm1067 = vcmp.lt.s32.totalorder %v1064, %v937
    %v1068 = vsel %vm1067, %v1064, %v937
    %vm1069 = vcmp.lt.s32.totalorder %v1066, %v939
    %v1070 = vsel %vm1069, %v1066, %v939
    %vm1071 = vcmp.lt.s32.totalorder %v1068, %v941
    %v1072 = vsel %vm1071, %v1068, %v941
    %vm1073 = vcmp.lt.s32.totalorder %v1070, %v943
    %v1074 = vsel %vm1073, %v1070, %v943
    %vm1075 = vcmp.lt.s32.totalorder %v1072, %v945
    %v1076 = vsel %vm1075, %v1072, %v945
    %vm1077 = vcmp.lt.s32.totalorder %v1074, %v947
    %v1078 = vsel %vm1077, %v1074, %v947
    %vm1079 = vcmp.lt.s32.totalorder %v1076, %v949
    %v1080 = vsel %vm1079, %v1076, %v949
    %vm1081 = vcmp.lt.s32.totalorder %v1078, %v951
    %v1082 = vsel %vm1081, %v1078, %v951
    %vm1083 = vcmp.lt.s32.totalorder %v1080, %v953
    %v1084 = vsel %vm1083, %v1080, %v953
    %vm1085 = vcmp.lt.s32.totalorder %v1082, %v955
    %v1086 = vsel %vm1085, %v1082, %v955
    %vm1087 = vcmp.lt.s32.totalorder %v1084, %v957
    %v1088 = vsel %vm1087, %v1084, %v957
    %vm1089 = vcmp.lt.s32.totalorder %v1086, %v959
    %v1090 = vsel %vm1089, %v1086, %v959
    %vm1091 = vcmp.lt.s32.totalorder %v1088, %v961
    %v1092 = vsel %vm1091, %v1088, %v961
    %vm1093 = vcmp.lt.s32.totalorder %v1090, %v963
    %v1094 = vsel %vm1093, %v1090, %v963
    %vm1095 = vcmp.lt.s32.totalorder %v1092, %v965
    %v1096 = vsel %vm1095, %v1092, %v965
    %vm1097 = vcmp.lt.s32.totalorder %v1094, %v967
    %v1098 = vsel %vm1097, %v1094, %v967
    %vm1099 = vcmp.lt.s32.totalorder %v1096, %v969
    %v1100 = vsel %vm1099, %v1096, %v969
    %vm1101 = vcmp.lt.s32.totalorder %v1098, %v971
    %v1102 = vsel %vm1101, %v1098, %v971
    %vm1103 = vcmp.lt.s32.totalorder %v1100, %v973
    %v1104 = vsel %vm1103, %v1100, %v973
    %vm1105 = vcmp.lt.s32.totalorder %v1102, %v975
    %v1106 = vsel %vm1105, %v1102, %v975
    %vm1107 = vcmp.lt.s32.totalorder %v1104, %v977
    %v1108 = vsel %vm1107, %v1104, %v977
    %vm1109 = vcmp.lt.s32.totalorder %v1106, %v979
    %v1110 = vsel %vm1109, %v1106, %v979
    %vm1111 = vcmp.lt.s32.totalorder %v1108, %v981
    %v1112 = vsel %vm1111, %v1108, %v981
    %vm1113 = vcmp.lt.s32.totalorder %v1110, %v983
    %v1114 = vsel %vm1113, %v1110, %v983
    %vm1115 = vcmp.lt.s32.totalorder %v1112, %v985
    %v1116 = vsel %vm1115, %v1112, %v985
    %vm1117 = vcmp.lt.s32.totalorder %v1114, %v987
    %v1118 = vsel %vm1117, %v1114, %v987
    %vm1119 = vcmp.lt.s32.totalorder %v1116, %v1118
    %v1120 = vsel %vm1119, %v1116, %v1118
    %v1121 = vrot.slane %v1120, 4
    %vm1122 = vcmp.lt.s32.totalorder %v1120, %v1121
    %v1123 = vsel %vm1122, %v1120, %v1121
    %v1124 = vrot.slane %v1123, 2
    %vm1125 = vcmp.lt.s32.totalorder %v1123, %v1124
    %v1126 = vsel %vm1125, %v1123, %v1124
    %v1127 = vrot.slane %v1126, 1
    %vm1128 = vcmp.lt.s32.totalorder %v1126, %v1127
    %v1129 = vsel %vm1128, %v1126, %v1127
    %v1130 = vcombine.low %v1058, %v1129
    %v1132 = vunpack.c.l.s4 1966171168
    %v1133 = vunpack.c.0.s8 %v1132
    %v1134 = vlaneseq
    %v1135 = vshrl.u32 %v1134, 7
    %v1136 = vsub.s32 %v1133, %v1135
    %v1137 = vrot.slane %v1130, %v1136
    %v1139 = vunpack.c.l.s4 1966171168
    %v1140 = vunpack.c.0.s8 %v1139
    %v1141 = vlaneseq
    %v1142 = vshrl.u32 %v1141, 7
    %v1143 = vsub.s32 %v1140, %v1142
    %v1144 = vrot.slane %v1137, %v1143
    %v1145 = vlaneseq
    %vm1146 = vcmp.ge.s32.totalorder %v1145, 0
    %vm1147 = vcmp.lt.s32.totalorder %v1145, 256
    %vm1148 = vmand %vm1146, %vm1147
    %1149 = vst.msk [vmem:[#allocation2] sm:$0x3] %vm1148, %v1144
    %v1150 = vmul.f32 %v822, 2.0
    %v1151 = vmul.f32 %v859, 2.0
    %v1152 = vsub.f32 2.0, %v1150
    %v1153 = vsub.f32 2.0, %v1151
    %v1156 = vcombine.low %v1152, %v1153
    %v1158 = vunpack.c.l.s4 1966171168
    %v1159 = vunpack.c.0.s8 %v1158
    %v1160 = vlaneseq
    %v1161 = vshrl.u32 %v1160, 7
    %v1162 = vsub.s32 %v1159, %v1161
    %v1163 = vrot.slane %v1156, %v1162
    %v1165 = vunpack.c.l.s4 1966171168
    %v1166 = vunpack.c.0.s8 %v1165
    %v1167 = vlaneseq
    %v1168 = vshrl.u32 %v1167, 7
    %v1169 = vsub.s32 %v1166, %v1168
    %v1170 = vrot.slane %v1163, %v1169
    %1172 = vst.msk [vmem:[#allocation4] sm:$0x3] %vm1148, %v1170
    // Predicated region
    $region10: #{tpu_custom_call.1} parent=1 // pred_check
      _
    $region11: #{tpu_custom_call.1} parent=1 // pred_check_branch
      %1174 = sbr.rel (0) target = $region13
    $region12: #{tpu_custom_call.1} parent=1 // pred_region
      %s1176 = ssub.s32 32, 32
      %1177 = vsyncadd [#allocation3], %s1176
      %s1179 = sshll.u32 [#allocation2], 4
      %s1180 = int_to_ptr.vmem [resolvable:$true] %s1179
      %1182 = dma.vmem_to_hbm [thread:$0]  %s1180, 32, %s2, [#allocation3]
    $region13: #{tpu_custom_call.1} parent=1 // pred_fallthru
      _
    // Predicated region
    $region14: #{tpu_custom_call.1} parent=1 // pred_check
      _
    $region15: #{tpu_custom_call.1} parent=1 // pred_check_branch
      %1184 = sbr.rel (0) target = $region17
    $region16: #{tpu_custom_call.1} parent=1 // pred_region
      %s1186 = ssub.s32 32, 32
      %1187 = vsyncadd [#allocation5], %s1186
      %s1189 = sshll.u32 [#allocation4], 4
      %s1190 = int_to_ptr.vmem [resolvable:$true] %s1189
      %1192 = dma.vmem_to_hbm [thread:$0]  %s1190, 32, %s3, [#allocation5]
    $region17: #{tpu_custom_call.1} parent=1 // pred_fallthru
      _
    // Predicated region
    $region18: #{tpu_custom_call.1} parent=1 // pred_check
      _
    $region19: #{tpu_custom_call.1} parent=1 // pred_check_branch
      %1194 = sbr.rel (0) target = $region21
    $region20: #{tpu_custom_call.1} parent=1 // pred_region
      %1195 = dma.done [#allocation3], 32
    $region21: #{tpu_custom_call.1} parent=1 // pred_fallthru
      _
    // Predicated region
    $region22: #{tpu_custom_call.1} parent=1 // pred_check
      _
    $region23: #{tpu_custom_call.1} parent=1 // pred_check_branch
      %1197 = sbr.rel (0) target = $region25
    $region24: #{tpu_custom_call.1} parent=1 // pred_region
      %1198 = dma.done [#allocation5], 32
    $region25: #{tpu_custom_call.1} parent=1 // pred_fallthru
      _
    %1199 = vsyncpa [#allocation3], 1
    %1200 = vsyncpa [#allocation5], 1

// kernel: tpu_custom_call.1
$region0: #{tpu_custom_call.1}
  #allocation0 [shape = 'u32[]', space=smem, size = 0x4, offset = 0x4, fixed_abs, tag = 'smem constant byte address 0x4 - core index']
  #allocation1 [shape = 'u32[144,128]{1,0:T(1,128)}', space=vmem, size = 0x12000, scoped, tag = 'internal scratch']
  %s0 = inlined_call_operand.vmem [shape: f32[256,32], index: 0, kind: input, shape index: {}]
  %s1 = inlined_call_operand.vmem [shape: f32[256,32], index: 1, kind: input, shape index: {}]
  %s2 = inlined_call_operand.hbm [shape: s32[1,256], index: 2, kind: output, shape index: {0}]
  %s3 = inlined_call_operand.hbm [shape: f32[1,256], index: 3, kind: output, shape index: {1}]
  %4 = xla_tuple %s2, %s3
  %s5 = sld [smem:[#allocation0]]
  $region26: #{tpu_custom_call.1} parent=0
    _
  %s7 = ssub.s32 1, %s5
  %s8 = scalar_select 0, %s7, %s5
  $region1: #{tpu_custom_call.1} parent=0
    #allocation2 [shape = 'u8[1024]{0}', space=vmem, size = 0x400, scoped, tag = 'output window, operand 0, single buffered']
    #allocation3 [shape = 's32[1]{0}', space=sflag, size = 0x4, scoped, tag = 'scoped memory for tpu_custom_call.1']
    #allocation4 [shape = 'u8[1024]{0}', space=vmem, size = 0x400, scoped, tag = 'output window, operand 1, single buffered']
    #allocation5 [shape = 's32[1]{0}', space=sflag, size = 0x4, scoped, tag = 'scoped memory for tpu_custom_call.1']
    %9 = vsyncpa [#allocation3], 0
    %10 = vsyncpa [#allocation5], 0
    // Predicated region
    $region2: #{tpu_custom_call.1} parent=1 // pred_check
      _
    $region3: #{tpu_custom_call.1} parent=1 // pred_check_branch
      %12 = sbr.rel (0) target = $region5
    $region4: #{tpu_custom_call.1} parent=1 // pred_region
      _
    $region5: #{tpu_custom_call.1} parent=1 // pred_fallthru
      _
    // Predicated region
    $region6: #{tpu_custom_call.1} parent=1 // pred_check
      _
    $region7: #{tpu_custom_call.1} parent=1 // pred_check_branch
      %14 = sbr.rel (0) target = $region9
    $region8: #{tpu_custom_call.1} parent=1 // pred_region
      _
    $region9: #{tpu_custom_call.1} parent=1 // pred_fallthru
      _
    %v15 = vld [vmem:[%s0] sm:$0xff]
    %v16 = vld [vmem:[%s0 + $0x8] sm:$0xff]
    %v17 = vld [vmem:[%s0 + $0x10] sm:$0xff]
    %v18 = vld [vmem:[%s0 + $0x18] sm:$0xff]
    %v19 = vld [vmem:[%s0 + $0x20] sm:$0xff]
    %v20 = vld [vmem:[%s0 + $0x28] sm:$0xff]
    %v21 = vld [vmem:[%s0 + $0x30] sm:$0xff]
    %v22 = vld [vmem:[%s0 + $0x38] sm:$0xff]
    %v23 = vld [vmem:[%s0 + $0x40] sm:$0xff]
    %v24 = vld [vmem:[%s0 + $0x48] sm:$0xff]
    %v25 = vld [vmem:[%s0 + $0x50] sm:$0xff]
    %v26 = vld [vmem:[%s0 + $0x58] sm:$0xff]
    %v27 = vld [vmem:[%s0 + $0x60] sm:$0xff]
    %v28 = vld [vmem:[%s0 + $0x68] sm:$0xff]
    %v29 = vld [vmem:[%s0 + $0x70] sm:$0xff]
    %v30 = vld [vmem:[%s0 + $0x78] sm:$0xff]
    %v31 = vld [vmem:[%s0 + $0x80] sm:$0xff]
    %v32 = vld [vmem:[%s0 + $0x88] sm:$0xff]
    %v33 = vld [vmem:[%s0 + $0x90] sm:$0xff]
    %v34 = vld [vmem:[%s0 + $0x98] sm:$0xff]
    %v35 = vld [vmem:[%s0 + $0xa0] sm:$0xff]
    %v36 = vld [vmem:[%s0 + $0xa8] sm:$0xff]
    %v37 = vld [vmem:[%s0 + $0xb0] sm:$0xff]
    %v38 = vld [vmem:[%s0 + $0xb8] sm:$0xff]
    %v39 = vld [vmem:[%s0 + $0xc0] sm:$0xff]
    %v40 = vld [vmem:[%s0 + $0xc8] sm:$0xff]
    %v41 = vld [vmem:[%s0 + $0xd0] sm:$0xff]
    %v42 = vld [vmem:[%s0 + $0xd8] sm:$0xff]
    %v43 = vld [vmem:[%s0 + $0xe0] sm:$0xff]
    %v44 = vld [vmem:[%s0 + $0xe8] sm:$0xff]
    %v45 = vld [vmem:[%s0 + $0xf0] sm:$0xff]
    %v46 = vld [vmem:[%s0 + $0xf8] sm:$0xff]
    %v47 = vld [vmem:[%s1] sm:$0xff]
    %v48 = vld [vmem:[%s1 + $0x8] sm:$0xff]
    %v49 = vld [vmem:[%s1 + $0x10] sm:$0xff]
    %v50 = vld [vmem:[%s1 + $0x18] sm:$0xff]
    %v51 = vld [vmem:[%s1 + $0x20] sm:$0xff]
    %v52 = vld [vmem:[%s1 + $0x28] sm:$0xff]
    %v53 = vld [vmem:[%s1 + $0x30] sm:$0xff]
    %v54 = vld [vmem:[%s1 + $0x38] sm:$0xff]
    %v55 = vld [vmem:[%s1 + $0x40] sm:$0xff]
    %v56 = vld [vmem:[%s1 + $0x48] sm:$0xff]
    %v57 = vld [vmem:[%s1 + $0x50] sm:$0xff]
    %v58 = vld [vmem:[%s1 + $0x58] sm:$0xff]
    %v59 = vld [vmem:[%s1 + $0x60] sm:$0xff]
    %v60 = vld [vmem:[%s1 + $0x68] sm:$0xff]
    %v61 = vld [vmem:[%s1 + $0x70] sm:$0xff]
    %v62 = vld [vmem:[%s1 + $0x78] sm:$0xff]
    %v63 = vld [vmem:[%s1 + $0x80] sm:$0xff]
    %v64 = vld [vmem:[%s1 + $0x88] sm:$0xff]
    %v65 = vld [vmem:[%s1 + $0x90] sm:$0xff]
    %v66 = vld [vmem:[%s1 + $0x98] sm:$0xff]
    %v67 = vld [vmem:[%s1 + $0xa0] sm:$0xff]
    %v68 = vld [vmem:[%s1 + $0xa8] sm:$0xff]
    %v69 = vld [vmem:[%s1 + $0xb0] sm:$0xff]
    %v70 = vld [vmem:[%s1 + $0xb8] sm:$0xff]
    %v71 = vld [vmem:[%s1 + $0xc0] sm:$0xff]
    %v72 = vld [vmem:[%s1 + $0xc8] sm:$0xff]
    %v73 = vld [vmem:[%s1 + $0xd0] sm:$0xff]
    %v74 = vld [vmem:[%s1 + $0xd8] sm:$0xff]
    %v75 = vld [vmem:[%s1 + $0xe0] sm:$0xff]
    %v76 = vld [vmem:[%s1 + $0xe8] sm:$0xff]
    %v77 = vld [vmem:[%s1 + $0xf0] sm:$0xff]
    %v78 = vld [vmem:[%s1 + $0xf8] sm:$0xff]
    %v79 = vmul.f32 %v15, %v15
    %v80 = vmul.f32 %v16, %v16
    %v81 = vmul.f32 %v17, %v17
    %v82 = vmul.f32 %v18, %v18
    %v83 = vmul.f32 %v19, %v19
    %v84 = vmul.f32 %v20, %v20
    %v85 = vmul.f32 %v21, %v21
    %v86 = vmul.f32 %v22, %v22
    %v87 = vmul.f32 %v23, %v23
    %v88 = vmul.f32 %v24, %v24
    %v89 = vmul.f32 %v25, %v25
    %v90 = vmul.f32 %v26, %v26
    %v91 = vmul.f32 %v27, %v27
    %v92 = vmul.f32 %v28, %v28
    %v93 = vmul.f32 %v29, %v29
    %v94 = vmul.f32 %v30, %v30
    %v95 = vmul.f32 %v31, %v31
    %v96 = vmul.f32 %v32, %v32
    %v97 = vmul.f32 %v33, %v33
    %v98 = vmul.f32 %v34, %v34
    %v99 = vmul.f32 %v35, %v35
    %v100 = vmul.f32 %v36, %v36
    %v101 = vmul.f32 %v37, %v37
    %v102 = vmul.f32 %v38, %v38
    %v103 = vmul.f32 %v39, %v39
    %v104 = vmul.f32 %v40, %v40
    %v105 = vmul.f32 %v41, %v41
    %v106 = vmul.f32 %v42, %v42
    %v107 = vmul.f32 %v43, %v43
    %v108 = vmul.f32 %v44, %v44
    %v109 = vmul.f32 %v45, %v45
    %v110 = vmul.f32 %v46, %v46
    %vm111 = vcmask 261120
    %v112 = vsel %vm111, %v79, 0.0
    %113 = vadd.xlane.f32.xlu0 %v112
    %v114 = vpop.xlane.xlu0 %113
    %v115 = vsel %vm111, %v80, 0.0
    %116 = vadd.xlane.f32.xlu0 %v115
    %v117 = vpop.xlane.xlu0 %116
    %v118 = vsel %vm111, %v81, 0.0
    %119 = vadd.xlane.f32.xlu0 %v118
    %v120 = vpop.xlane.xlu0 %119
    %v121 = vsel %vm111, %v82, 0.0
    %122 = vadd.xlane.f32.xlu0 %v121
    %v123 = vpop.xlane.xlu0 %122
    %v124 = vsel %vm111, %v83, 0.0
    %125 = vadd.xlane.f32.xlu0 %v124
    %v126 = vpop.xlane.xlu0 %125
    %v127 = vsel %vm111, %v84, 0.0
    %128 = vadd.xlane.f32.xlu0 %v127
    %v129 = vpop.xlane.xlu0 %128
    %v130 = vsel %vm111, %v85, 0.0
    %131 = vadd.xlane.f32.xlu0 %v130
    %v132 = vpop.xlane.xlu0 %131
    %v133 = vsel %vm111, %v86, 0.0
    %134 = vadd.xlane.f32.xlu0 %v133
    %v135 = vpop.xlane.xlu0 %134
    %v136 = vsel %vm111, %v87, 0.0
    %137 = vadd.xlane.f32.xlu0 %v136
    %v138 = vpop.xlane.xlu0 %137
    %v139 = vsel %vm111, %v88, 0.0
    %140 = vadd.xlane.f32.xlu0 %v139
    %v141 = vpop.xlane.xlu0 %140
    %v142 = vsel %vm111, %v89, 0.0
    %143 = vadd.xlane.f32.xlu0 %v142
    %v144 = vpop.xlane.xlu0 %143
    %v145 = vsel %vm111, %v90, 0.0
    %146 = vadd.xlane.f32.xlu0 %v145
    %v147 = vpop.xlane.xlu0 %146
    %v148 = vsel %vm111, %v91, 0.0
    %149 = vadd.xlane.f32.xlu0 %v148
    %v150 = vpop.xlane.xlu0 %149
    %v151 = vsel %vm111, %v92, 0.0
    %152 = vadd.xlane.f32.xlu0 %v151
    %v153 = vpop.xlane.xlu0 %152
    %v154 = vsel %vm111, %v93, 0.0
    %155 = vadd.xlane.f32.xlu0 %v154
    %v156 = vpop.xlane.xlu0 %155
    %v157 = vsel %vm111, %v94, 0.0
    %158 = vadd.xlane.f32.xlu0 %v157
    %v159 = vpop.xlane.xlu0 %158
    %v160 = vsel %vm111, %v95, 0.0
    %161 = vadd.xlane.f32.xlu0 %v160
    %v162 = vpop.xlane.xlu0 %161
    %v163 = vsel %vm111, %v96, 0.0
    %164 = vadd.xlane.f32.xlu0 %v163
    %v165 = vpop.xlane.xlu0 %164
    %v166 = vsel %vm111, %v97, 0.0
    %167 = vadd.xlane.f32.xlu0 %v166
    %v168 = vpop.xlane.xlu0 %167
    %v169 = vsel %vm111, %v98, 0.0
    %170 = vadd.xlane.f32.xlu0 %v169
    %v171 = vpop.xlane.xlu0 %170
    %v172 = vsel %vm111, %v99, 0.0
    %173 = vadd.xlane.f32.xlu0 %v172
    %v174 = vpop.xlane.xlu0 %173
    %v175 = vsel %vm111, %v100, 0.0
    %176 = vadd.xlane.f32.xlu0 %v175
    %v177 = vpop.xlane.xlu0 %176
    %v178 = vsel %vm111, %v101, 0.0
    %179 = vadd.xlane.f32.xlu0 %v178
    %v180 = vpop.xlane.xlu0 %179
    %v181 = vsel %vm111, %v102, 0.0
    %182 = vadd.xlane.f32.xlu0 %v181
    %v183 = vpop.xlane.xlu0 %182
    %v184 = vsel %vm111, %v103, 0.0
    %185 = vadd.xlane.f32.xlu0 %v184
    %v186 = vpop.xlane.xlu0 %185
    %v187 = vsel %vm111, %v104, 0.0
    %188 = vadd.xlane.f32.xlu0 %v187
    %v189 = vpop.xlane.xlu0 %188
    %v190 = vsel %vm111, %v105, 0.0
    %191 = vadd.xlane.f32.xlu0 %v190
    %v192 = vpop.xlane.xlu0 %191
    %v193 = vsel %vm111, %v106, 0.0
    %194 = vadd.xlane.f32.xlu0 %v193
    %v195 = vpop.xlane.xlu0 %194
    %v196 = vsel %vm111, %v107, 0.0
    %197 = vadd.xlane.f32.xlu0 %v196
    %v198 = vpop.xlane.xlu0 %197
    %v199 = vsel %vm111, %v108, 0.0
    %200 = vadd.xlane.f32.xlu0 %v199
    %v201 = vpop.xlane.xlu0 %200
    %v202 = vsel %vm111, %v109, 0.0
    %203 = vadd.xlane.f32.xlu0 %v202
    %v204 = vpop.xlane.xlu0 %203
    %v205 = vsel %vm111, %v110, 0.0
    %206 = vadd.xlane.f32.xlu0 %v205
    %v207 = vpop.xlane.xlu0 %206
    %v208 = vmax.f32 %v114, 1e-24
    %v209 = vmax.f32 %v117, 1e-24
    %v210 = vmax.f32 %v120, 1e-24
    %v211 = vmax.f32 %v123, 1e-24
    %v212 = vmax.f32 %v126, 1e-24
    %v213 = vmax.f32 %v129, 1e-24
    %v214 = vmax.f32 %v132, 1e-24
    %v215 = vmax.f32 %v135, 1e-24
    %v216 = vmax.f32 %v138, 1e-24
    %v217 = vmax.f32 %v141, 1e-24
    %v218 = vmax.f32 %v144, 1e-24
    %v219 = vmax.f32 %v147, 1e-24
    %v220 = vmax.f32 %v150, 1e-24
    %v221 = vmax.f32 %v153, 1e-24
    %v222 = vmax.f32 %v156, 1e-24
    %v223 = vmax.f32 %v159, 1e-24
    %v224 = vmax.f32 %v162, 1e-24
    %v225 = vmax.f32 %v165, 1e-24
    %v226 = vmax.f32 %v168, 1e-24
    %v227 = vmax.f32 %v171, 1e-24
    %v228 = vmax.f32 %v174, 1e-24
    %v229 = vmax.f32 %v177, 1e-24
    %v230 = vmax.f32 %v180, 1e-24
    %v231 = vmax.f32 %v183, 1e-24
    %v232 = vmax.f32 %v186, 1e-24
    %v233 = vmax.f32 %v189, 1e-24
    %v234 = vmax.f32 %v192, 1e-24
    %v235 = vmax.f32 %v195, 1e-24
    %v236 = vmax.f32 %v198, 1e-24
    %v237 = vmax.f32 %v201, 1e-24
    %v238 = vmax.f32 %v204, 1e-24
    %v239 = vmax.f32 %v207, 1e-24
    %v240 = vrsqrt.pop %v208
    %v241 = vrsqrt.pop %v209
    %v242 = vrsqrt.pop %v210
    %v243 = vrsqrt.pop %v211
    %v244 = vrsqrt.pop %v212
    %v245 = vrsqrt.pop %v213
    %v246 = vrsqrt.pop %v214
    %v247 = vrsqrt.pop %v215
    %v248 = vrsqrt.pop %v216
    %v249 = vrsqrt.pop %v217
    %v250 = vrsqrt.pop %v218
    %v251 = vrsqrt.pop %v219
    %v252 = vrsqrt.pop %v220
    %v253 = vrsqrt.pop %v221
    %v254 = vrsqrt.pop %v222
    %v255 = vrsqrt.pop %v223
    %v256 = vrsqrt.pop %v224
    %v257 = vrsqrt.pop %v225
    %v258 = vrsqrt.pop %v226
    %v259 = vrsqrt.pop %v227
    %v260 = vrsqrt.pop %v228
    %v261 = vrsqrt.pop %v229
    %v262 = vrsqrt.pop %v230
    %v263 = vrsqrt.pop %v231
    %v264 = vrsqrt.pop %v232
    %v265 = vrsqrt.pop %v233
    %v266 = vrsqrt.pop %v234
    %v267 = vrsqrt.pop %v235
    %v268 = vrsqrt.pop %v236
    %v269 = vrsqrt.pop %v237
    %v270 = vrsqrt.pop %v238
    %v271 = vrsqrt.pop %v239
    %v272 = vmul.f32 %v15, %v240
    %v273 = vmul.f32 %v16, %v241
    %v274 = vmul.f32 %v17, %v242
    %v275 = vmul.f32 %v18, %v243
    %v276 = vmul.f32 %v19, %v244
    %v277 = vmul.f32 %v20, %v245
    %v278 = vmul.f32 %v21, %v246
    %v279 = vmul.f32 %v22, %v247
    %v280 = vmul.f32 %v23, %v248
    %v281 = vmul.f32 %v24, %v249
    %v282 = vmul.f32 %v25, %v250
    %v283 = vmul.f32 %v26, %v251
    %v284 = vmul.f32 %v27, %v252
    %v285 = vmul.f32 %v28, %v253
    %v286 = vmul.f32 %v29, %v254
    %v287 = vmul.f32 %v30, %v255
    %v288 = vmul.f32 %v31, %v256
    %v289 = vmul.f32 %v32, %v257
    %v290 = vmul.f32 %v33, %v258
    %v291 = vmul.f32 %v34, %v259
    %v292 = vmul.f32 %v35, %v260
    %v293 = vmul.f32 %v36, %v261
    %v294 = vmul.f32 %v37, %v262
    %v295 = vmul.f32 %v38, %v263
    %v296 = vmul.f32 %v39, %v264
    %v297 = vmul.f32 %v40, %v265
    %v298 = vmul.f32 %v41, %v266
    %v299 = vmul.f32 %v42, %v267
    %v300 = vmul.f32 %v43, %v268
    %v301 = vmul.f32 %v44, %v269
    %v302 = vmul.f32 %v45, %v270
    %v303 = vmul.f32 %v46, %v271
    %v305 = vsel %vm111, %v47, 0
    %v308 = vsel %vm111, %v48, 0
    %v311 = vsel %vm111, %v49, 0
    %v314 = vsel %vm111, %v50, 0
    %v317 = vsel %vm111, %v51, 0
    %v320 = vsel %vm111, %v52, 0
    %v323 = vsel %vm111, %v53, 0
    %v326 = vsel %vm111, %v54, 0
    %v329 = vsel %vm111, %v55, 0
    %v332 = vsel %vm111, %v56, 0
    %v335 = vsel %vm111, %v57, 0
    %v338 = vsel %vm111, %v58, 0
    %v341 = vsel %vm111, %v59, 0
    %v344 = vsel %vm111, %v60, 0
    %v347 = vsel %vm111, %v61, 0
    %v350 = vsel %vm111, %v62, 0
    %v353 = vsel %vm111, %v63, 0
    %v356 = vsel %vm111, %v64, 0
    %v359 = vsel %vm111, %v65, 0
    %v362 = vsel %vm111, %v66, 0
    %v365 = vsel %vm111, %v67, 0
    %v368 = vsel %vm111, %v68, 0
    %v371 = vsel %vm111, %v69, 0
    %v374 = vsel %vm111, %v70, 0
    %v377 = vsel %vm111, %v71, 0
    %v380 = vsel %vm111, %v72, 0
    %v383 = vsel %vm111, %v73, 0
    %v386 = vsel %vm111, %v74, 0
    %v389 = vsel %vm111, %v75, 0
    %v392 = vsel %vm111, %v76, 0
    %v395 = vsel %vm111, %v77, 0
    %v398 = vsel %vm111, %v78, 0
    %v401 = vsel %vm111, %v272, 0
    %v404 = vsel %vm111, %v273, 0
    %v407 = vsel %vm111, %v274, 0
    %v410 = vsel %vm111, %v275, 0
    %v413 = vsel %vm111, %v276, 0
    %v416 = vsel %vm111, %v277, 0
    %v419 = vsel %vm111, %v278, 0
    %v422 = vsel %vm111, %v279, 0
    %v425 = vsel %vm111, %v280, 0
    %v428 = vsel %vm111, %v281, 0
    %v431 = vsel %vm111, %v282, 0
    %v434 = vsel %vm111, %v283, 0
    %v437 = vsel %vm111, %v284, 0
    %v440 = vsel %vm111, %v285, 0
    %v443 = vsel %vm111, %v286, 0
    %v446 = vsel %vm111, %v287, 0
    %v449 = vsel %vm111, %v288, 0
    %v452 = vsel %vm111, %v289, 0
    %v455 = vsel %vm111, %v290, 0
    %v458 = vsel %vm111, %v291, 0
    %v461 = vsel %vm111, %v292, 0
    %v464 = vsel %vm111, %v293, 0
    %v467 = vsel %vm111, %v294, 0
    %v470 = vsel %vm111, %v295, 0
    %v473 = vsel %vm111, %v296, 0
    %v476 = vsel %vm111, %v297, 0
    %v479 = vsel %vm111, %v298, 0
    %v482 = vsel %vm111, %v299, 0
    %v485 = vsel %vm111, %v300, 0
    %v488 = vsel %vm111, %v301, 0
    %v491 = vsel %vm111, %v302, 0
    %v494 = vsel %vm111, %v303, 0
    %496 = vmatprep.subr.mxu0 0.0
    %497 = vmatpush1.xpose.msra.mxu0 %v446
    %498 = vmatprep.subr.mxu0 0.0
    %499 = vmatpush1.xpose.msra.mxu0 %v443
    %500 = vmatprep.subr.mxu0 0.0
    %501 = vmatpush1.xpose.msra.mxu0 %v440
    %502 = vmatprep.subr.mxu0 0.0
    %503 = vmatpush1.xpose.msra.mxu0 %v437
    %504 = vmatprep.subr.mxu0 0.0
    %505 = vmatpush1.xpose.msra.mxu0 %v434
    %506 = vmatprep.subr.mxu0 0.0
    %507 = vmatpush1.xpose.msra.mxu0 %v431
    %508 = vmatprep.subr.mxu0 0.0
    %509 = vmatpush1.xpose.msra.mxu0 %v428
    %510 = vmatprep.subr.mxu0 0.0
    %511 = vmatpush1.xpose.msra.mxu0 %v425
    %512 = vmatprep.subr.mxu0 0.0
    %513 = vmatpush1.xpose.msra.mxu0 %v422
    %514 = vmatprep.subr.mxu0 0.0
    %515 = vmatpush1.xpose.msra.mxu0 %v419
    %516 = vmatprep.subr.mxu0 0.0
    %517 = vmatpush1.xpose.msra.mxu0 %v416
    %518 = vmatprep.subr.mxu0 0.0
    %519 = vmatpush1.xpose.msra.mxu0 %v413
    %520 = vmatprep.subr.mxu0 0.0
    %521 = vmatpush1.xpose.msra.mxu0 %v410
    %522 = vmatprep.subr.mxu0 0.0
    %523 = vmatpush1.xpose.msra.mxu0 %v407
    %524 = vmatprep.subr.mxu0 0.0
    %525 = vmatpush1.xpose.msra.mxu0 %v404
    %526 = vmatprep.subr.mxu0 0.0
    %527 = vmatpush1.xpose.msra.mxu0 %v401
    %528 = vmatprep.subr.mxu0 0.0
    %529 = vmatpush2.xpose.msra.mxu0 %v494
    %530 = vmatprep.subr.mxu0 0.0
    %531 = vmatpush2.xpose.msra.mxu0 %v491
    %532 = vmatprep.subr.mxu0 0.0
    %533 = vmatpush2.xpose.msra.mxu0 %v488
    %534 = vmatprep.subr.mxu0 0.0
    %535 = vmatpush2.xpose.msra.mxu0 %v485
    %536 = vmatprep.subr.mxu0 0.0
    %537 = vmatpush2.xpose.msra.mxu0 %v482
    %538 = vmatprep.subr.mxu0 0.0
    %539 = vmatpush2.xpose.msra.mxu0 %v479
    %540 = vmatprep.subr.mxu0 0.0
    %541 = vmatpush2.xpose.msra.mxu0 %v476
    %542 = vmatprep.subr.mxu0 0.0
    %543 = vmatpush2.xpose.msra.mxu0 %v473
    %544 = vmatprep.subr.mxu0 0.0
    %545 = vmatpush2.xpose.msra.mxu0 %v470
    %546 = vmatprep.subr.mxu0 0.0
    %547 = vmatpush2.xpose.msra.mxu0 %v467
    %548 = vmatprep.subr.mxu0 0.0
    %549 = vmatpush2.xpose.msra.mxu0 %v464
    %550 = vmatprep.subr.mxu0 0.0
    %551 = vmatpush2.xpose.msra.mxu0 %v461
    %552 = vmatprep.subr.mxu0 0.0
    %553 = vmatpush2.xpose.msra.mxu0 %v458
    %554 = vmatprep.subr.mxu0 0.0
    %555 = vmatpush2.xpose.msra.mxu0 %v455
    %556 = vmatprep.subr.mxu0 0.0
    %557 = vmatpush2.xpose.msra.mxu0 %v452
    %558 = vmatprep.subr.mxu0 0.0
    %559 = vmatpush2.xpose.msra.mxu0 %v449
    %560 = vmatprep.mubr.f32.mxu0 0.0
    %561 = vmatmul.mubr.f32.gmra.mxu0 %v305
    %v562 = vpop.f32.mrf.mxu0
    %v563 = vadd.f32 0.0, %v562
    %v564 = vpop.f32.mrf.mxu0
    %v565 = vadd.f32 0.0, %v564
    %566 = vmatprep.mubr.f32.mxu0 0.0
    %567 = vmatmul.mubr.f32.gmra.mxu0 %v308
    %v568 = vpop.f32.mrf.mxu0
    %v569 = vadd.f32 0.0, %v568
    %v570 = vpop.f32.mrf.mxu0
    %v571 = vadd.f32 0.0, %v570
    %572 = vmatprep.mubr.f32.mxu0 0.0
    %573 = vmatmul.mubr.f32.gmra.mxu0 %v311
    %v574 = vpop.f32.mrf.mxu0
    %v575 = vadd.f32 0.0, %v574
    %v576 = vpop.f32.mrf.mxu0
    %v577 = vadd.f32 0.0, %v576
    %578 = vmatprep.mubr.f32.mxu0 0.0
    %579 = vmatmul.mubr.f32.gmra.mxu0 %v314
    %v580 = vpop.f32.mrf.mxu0
    %v581 = vadd.f32 0.0, %v580
    %v582 = vpop.f32.mrf.mxu0
    %v583 = vadd.f32 0.0, %v582
    %584 = vmatprep.mubr.f32.mxu0 0.0
    %585 = vmatmul.mubr.f32.gmra.mxu0 %v317
    %v586 = vpop.f32.mrf.mxu0
    %v587 = vadd.f32 0.0, %v586
    %v588 = vpop.f32.mrf.mxu0
    %v589 = vadd.f32 0.0, %v588
    %590 = vmatprep.mubr.f32.mxu0 0.0
    %591 = vmatmul.mubr.f32.gmra.mxu0 %v320
    %v592 = vpop.f32.mrf.mxu0
    %v593 = vadd.f32 0.0, %v592
    %v594 = vpop.f32.mrf.mxu0
    %v595 = vadd.f32 0.0, %v594
    %596 = vmatprep.mubr.f32.mxu0 0.0
    %597 = vmatmul.mubr.f32.gmra.mxu0 %v323
    %v598 = vpop.f32.mrf.mxu0
    %v599 = vadd.f32 0.0, %v598
    %v600 = vpop.f32.mrf.mxu0
    %v601 = vadd.f32 0.0, %v600
    %602 = vmatprep.mubr.f32.mxu0 0.0
    %603 = vmatmul.mubr.f32.gmra.mxu0 %v326
    %v604 = vpop.f32.mrf.mxu0
    %v605 = vadd.f32 0.0, %v604
    %v606 = vpop.f32.mrf.mxu0
    %v607 = vadd.f32 0.0, %v606
    %608 = vmatprep.mubr.f32.mxu0 0.0
    %609 = vmatmul.mubr.f32.gmra.mxu0 %v329
    %v610 = vpop.f32.mrf.mxu0
    %v611 = vadd.f32 0.0, %v610
    %v612 = vpop.f32.mrf.mxu0
    %v613 = vadd.f32 0.0, %v612
    %614 = vmatprep.mubr.f32.mxu0 0.0
    %615 = vmatmul.mubr.f32.gmra.mxu0 %v332
    %v616 = vpop.f32.mrf.mxu0
    %v617 = vadd.f32 0.0, %v616
    %v618 = vpop.f32.mrf.mxu0
    %v619 = vadd.f32 0.0, %v618
    %620 = vmatprep.mubr.f32.mxu0 0.0
    %621 = vmatmul.mubr.f32.gmra.mxu0 %v335
    %v622 = vpop.f32.mrf.mxu0
    %v623 = vadd.f32 0.0, %v622
    %v624 = vpop.f32.mrf.mxu0
    %v625 = vadd.f32 0.0, %v624
    %626 = vmatprep.mubr.f32.mxu0 0.0
    %627 = vmatmul.mubr.f32.gmra.mxu0 %v338
    %v628 = vpop.f32.mrf.mxu0
    %v629 = vadd.f32 0.0, %v628
    %v630 = vpop.f32.mrf.mxu0
    %v631 = vadd.f32 0.0, %v630
    %632 = vmatprep.mubr.f32.mxu0 0.0
    %633 = vmatmul.mubr.f32.gmra.mxu0 %v341
    %v634 = vpop.f32.mrf.mxu0
    %v635 = vadd.f32 0.0, %v634
    %v636 = vpop.f32.mrf.mxu0
    %v637 = vadd.f32 0.0, %v636
    %638 = vmatprep.mubr.f32.mxu0 0.0
    %639 = vmatmul.mubr.f32.gmra.mxu0 %v344
    %v640 = vpop.f32.mrf.mxu0
    %v641 = vadd.f32 0.0, %v640
    %v642 = vpop.f32.mrf.mxu0
    %v643 = vadd.f32 0.0, %v642
    %644 = vmatprep.mubr.f32.mxu0 0.0
    %645 = vmatmul.mubr.f32.gmra.mxu0 %v347
    %v646 = vpop.f32.mrf.mxu0
    %v647 = vadd.f32 0.0, %v646
    %v648 = vpop.f32.mrf.mxu0
    %v649 = vadd.f32 0.0, %v648
    %650 = vmatprep.mubr.f32.mxu0 0.0
    %651 = vmatmul.mubr.f32.gmra.mxu0 %v350
    %v652 = vpop.f32.mrf.mxu0
    %v653 = vadd.f32 0.0, %v652
    %v654 = vpop.f32.mrf.mxu0
    %v655 = vadd.f32 0.0, %v654
    %656 = vmatprep.mubr.f32.mxu0 0.0
    %657 = vmatmul.mubr.f32.gmra.mxu0 %v353
    %v658 = vpop.f32.mrf.mxu0
    %v659 = vadd.f32 0.0, %v658
    %v660 = vpop.f32.mrf.mxu0
    %v661 = vadd.f32 0.0, %v660
    %662 = vmatprep.mubr.f32.mxu0 0.0
    %663 = vmatmul.mubr.f32.gmra.mxu0 %v356
    %v664 = vpop.f32.mrf.mxu0
    %v665 = vadd.f32 0.0, %v664
    %v666 = vpop.f32.mrf.mxu0
    %v667 = vadd.f32 0.0, %v666
    %668 = vmatprep.mubr.f32.mxu0 0.0
    %669 = vmatmul.mubr.f32.gmra.mxu0 %v359
    %v670 = vpop.f32.mrf.mxu0
    %v671 = vadd.f32 0.0, %v670
    %v672 = vpop.f32.mrf.mxu0
    %v673 = vadd.f32 0.0, %v672
    %674 = vmatprep.mubr.f32.mxu0 0.0
    %675 = vmatmul.mubr.f32.gmra.mxu0 %v362
    %v676 = vpop.f32.mrf.mxu0
    %v677 = vadd.f32 0.0, %v676
    %v678 = vpop.f32.mrf.mxu0
    %v679 = vadd.f32 0.0, %v678
    %680 = vmatprep.mubr.f32.mxu0 0.0
    %681 = vmatmul.mubr.f32.gmra.mxu0 %v365
    %v682 = vpop.f32.mrf.mxu0
    %v683 = vadd.f32 0.0, %v682
    %v684 = vpop.f32.mrf.mxu0
    %v685 = vadd.f32 0.0, %v684
    %686 = vmatprep.mubr.f32.mxu0 0.0
    %687 = vmatmul.mubr.f32.gmra.mxu0 %v368
    %v688 = vpop.f32.mrf.mxu0
    %v689 = vadd.f32 0.0, %v688
    %v690 = vpop.f32.mrf.mxu0
    %v691 = vadd.f32 0.0, %v690
    %692 = vmatprep.mubr.f32.mxu0 0.0
    %693 = vmatmul.mubr.f32.gmra.mxu0 %v371
    %v694 = vpop.f32.mrf.mxu0
    %v695 = vadd.f32 0.0, %v694
    %v696 = vpop.f32.mrf.mxu0
    %v697 = vadd.f32 0.0, %v696
    %698 = vmatprep.mubr.f32.mxu0 0.0
    %699 = vmatmul.mubr.f32.gmra.mxu0 %v374
    %v700 = vpop.f32.mrf.mxu0
    %v701 = vadd.f32 0.0, %v700
    %v702 = vpop.f32.mrf.mxu0
    %v703 = vadd.f32 0.0, %v702
    %704 = vmatprep.mubr.f32.mxu0 0.0
    %705 = vmatmul.mubr.f32.gmra.mxu0 %v377
    %v706 = vpop.f32.mrf.mxu0
    %v707 = vadd.f32 0.0, %v706
    %v708 = vpop.f32.mrf.mxu0
    %v709 = vadd.f32 0.0, %v708
    %710 = vmatprep.mubr.f32.mxu0 0.0
    %711 = vmatmul.mubr.f32.gmra.mxu0 %v380
    %v712 = vpop.f32.mrf.mxu0
    %v713 = vadd.f32 0.0, %v712
    %v714 = vpop.f32.mrf.mxu0
    %v715 = vadd.f32 0.0, %v714
    %716 = vmatprep.mubr.f32.mxu0 0.0
    %717 = vmatmul.mubr.f32.gmra.mxu0 %v383
    %v718 = vpop.f32.mrf.mxu0
    %v719 = vadd.f32 0.0, %v718
    %v720 = vpop.f32.mrf.mxu0
    %v721 = vadd.f32 0.0, %v720
    %722 = vmatprep.mubr.f32.mxu0 0.0
    %723 = vmatmul.mubr.f32.gmra.mxu0 %v386
    %v724 = vpop.f32.mrf.mxu0
    %v725 = vadd.f32 0.0, %v724
    %v726 = vpop.f32.mrf.mxu0
    %v727 = vadd.f32 0.0, %v726
    %728 = vmatprep.mubr.f32.mxu0 0.0
    %729 = vmatmul.mubr.f32.gmra.mxu0 %v389
    %v730 = vpop.f32.mrf.mxu0
    %v731 = vadd.f32 0.0, %v730
    %v732 = vpop.f32.mrf.mxu0
    %v733 = vadd.f32 0.0, %v732
    %734 = vmatprep.mubr.f32.mxu0 0.0
    %735 = vmatmul.mubr.f32.gmra.mxu0 %v392
    %v736 = vpop.f32.mrf.mxu0
    %v737 = vadd.f32 0.0, %v736
    %v738 = vpop.f32.mrf.mxu0
    %v739 = vadd.f32 0.0, %v738
    %740 = vmatprep.mubr.f32.mxu0 0.0
    %741 = vmatmul.mubr.f32.gmra.mxu0 %v395
    %v742 = vpop.f32.mrf.mxu0
    %v743 = vadd.f32 0.0, %v742
    %v744 = vpop.f32.mrf.mxu0
    %v745 = vadd.f32 0.0, %v744
    %746 = vmatprep.mubr.f32.mxu0 0.0
    %747 = vmatmul.mubr.f32.gmra.mxu0 %v398
    %v748 = vpop.f32.mrf.mxu0
    %v749 = vadd.f32 0.0, %v748
    %v750 = vpop.f32.mrf.mxu0
    %v751 = vadd.f32 0.0, %v750
    %752 = vdwg.mxu0
    %v753 = vlaneseq
    %v754 = vshrl.u32 %v753, 7
    %v755 = vadd.s32 %v754, 8
    %v756 = vadd.s32 %v754, 16
    %v757 = vadd.s32 %v754, 24
    %v758 = vadd.s32 %v754, 32
    %v759 = vadd.s32 %v754, 40
    %v760 = vadd.s32 %v754, 48
    %v761 = vadd.s32 %v754, 56
    %v762 = vadd.s32 %v754, 64
    %v763 = vadd.s32 %v754, 72
    %v764 = vadd.s32 %v754, 80
    %v765 = vadd.s32 %v754, 88
    %v766 = vadd.s32 %v754, 96
    %v767 = vadd.s32 %v754, 104
    %v768 = vadd.s32 %v754, 112
    %v769 = vadd.s32 %v754, 120
    %v770 = vadd.s32 %v754, 128
    %v771 = vadd.s32 %v754, 136
    %v772 = vadd.s32 %v754, 144
    %v773 = vadd.s32 %v754, 152
    %v774 = vadd.s32 %v754, 160
    %v775 = vadd.s32 %v754, 168
    %v776 = vadd.s32 %v754, 176
    %v777 = vadd.s32 %v754, 184
    %v778 = vadd.s32 %v754, 192
    %v779 = vadd.s32 %v754, 200
    %v780 = vadd.s32 %v754, 208
    %v781 = vadd.s32 %v754, 216
    %v782 = vadd.s32 %v754, 224
    %v783 = vadd.s32 %v754, 232
    %v784 = vadd.s32 %v754, 240
    %v785 = vadd.s32 %v754, 248
    %v786 = vmax.f32 %v563, %v575
    %v787 = vmax.f32 %v569, %v581
    %v788 = vmax.f32 %v786, %v587
    %v789 = vmax.f32 %v787, %v593
    %v790 = vmax.f32 %v788, %v599
    %v791 = vmax.f32 %v789, %v605
    %v792 = vmax.f32 %v790, %v611
    %v793 = vmax.f32 %v791, %v617
    %v794 = vmax.f32 %v792, %v623
    %v795 = vmax.f32 %v793, %v629
    %v796 = vmax.f32 %v794, %v635
    %v797 = vmax.f32 %v795, %v641
    %v798 = vmax.f32 %v796, %v647
    %v799 = vmax.f32 %v797, %v653
    %v800 = vmax.f32 %v798, %v659
    %v801 = vmax.f32 %v799, %v665
    %v802 = vmax.f32 %v800, %v671
    %v803 = vmax.f32 %v801, %v677
    %v804 = vmax.f32 %v802, %v683
    %v805 = vmax.f32 %v803, %v689
    %v806 = vmax.f32 %v804, %v695
    %v807 = vmax.f32 %v805, %v701
    %v808 = vmax.f32 %v806, %v707
    %v809 = vmax.f32 %v807, %v713
    %v810 = vmax.f32 %v808, %v719
    %v811 = vmax.f32 %v809, %v725
    %v812 = vmax.f32 %v810, %v731
    %v813 = vmax.f32 %v811, %v737
    %v814 = vmax.f32 %v812, %v743
    %v815 = vmax.f32 %v813, %v749
    %v816 = vmax.f32 %v814, %v815
    %v817 = vrot.slane %v816, 4
    %v818 = vmax.f32 %v816, %v817
    %v819 = vrot.slane %v818, 2
    %v820 = vmax.f32 %v818, %v819
    %v821 = vrot.slane %v820, 1
    %v822 = vmax.f32 %v820, %v821
    %v823 = vmax.f32 %v565, %v577
    %v824 = vmax.f32 %v571, %v583
    %v825 = vmax.f32 %v823, %v589
    %v826 = vmax.f32 %v824, %v595
    %v827 = vmax.f32 %v825, %v601
    %v828 = vmax.f32 %v826, %v607
    %v829 = vmax.f32 %v827, %v613
    %v830 = vmax.f32 %v828, %v619
    %v831 = vmax.f32 %v829, %v625
    %v832 = vmax.f32 %v830, %v631
    %v833 = vmax.f32 %v831, %v637
    %v834 = vmax.f32 %v832, %v643
    %v835 = vmax.f32 %v833, %v649
    %v836 = vmax.f32 %v834, %v655
    %v837 = vmax.f32 %v835, %v661
    %v838 = vmax.f32 %v836, %v667
    %v839 = vmax.f32 %v837, %v673
    %v840 = vmax.f32 %v838, %v679
    %v841 = vmax.f32 %v839, %v685
    %v842 = vmax.f32 %v840, %v691
    %v843 = vmax.f32 %v841, %v697
    %v844 = vmax.f32 %v842, %v703
    %v845 = vmax.f32 %v843, %v709
    %v846 = vmax.f32 %v844, %v715
    %v847 = vmax.f32 %v845, %v721
    %v848 = vmax.f32 %v846, %v727
    %v849 = vmax.f32 %v847, %v733
    %v850 = vmax.f32 %v848, %v739
    %v851 = vmax.f32 %v849, %v745
    %v852 = vmax.f32 %v850, %v751
    %v853 = vmax.f32 %v851, %v852
    %v854 = vrot.slane %v853, 4
    %v855 = vmax.f32 %v853, %v854
    %v856 = vrot.slane %v855, 2
    %v857 = vmax.f32 %v855, %v856
    %v858 = vrot.slane %v857, 1
    %v859 = vmax.f32 %v857, %v858
    %vm860 = vcmp.eq.f32.partialorder %v563, %v822
    %vm861 = vcmp.eq.f32.partialorder %v565, %v859
    %vm862 = vcmp.eq.f32.partialorder %v569, %v822
    %vm863 = vcmp.eq.f32.partialorder %v571, %v859
    %vm864 = vcmp.eq.f32.partialorder %v575, %v822
    %vm865 = vcmp.eq.f32.partialorder %v577, %v859
    %vm866 = vcmp.eq.f32.partialorder %v581, %v822
    %vm867 = vcmp.eq.f32.partialorder %v583, %v859
    %vm868 = vcmp.eq.f32.partialorder %v587, %v822
    %vm869 = vcmp.eq.f32.partialorder %v589, %v859
    %vm870 = vcmp.eq.f32.partialorder %v593, %v822
    %vm871 = vcmp.eq.f32.partialorder %v595, %v859
    %vm872 = vcmp.eq.f32.partialorder %v599, %v822
    %vm873 = vcmp.eq.f32.partialorder %v601, %v859
    %vm874 = vcmp.eq.f32.partialorder %v605, %v822
    %vm875 = vcmp.eq.f32.partialorder %v607, %v859
    %vm876 = vcmp.eq.f32.partialorder %v611, %v822
    %vm877 = vcmp.eq.f32.partialorder %v613, %v859
    %vm878 = vcmp.eq.f32.partialorder %v617, %v822
    %vm879 = vcmp.eq.f32.partialorder %v619, %v859
    %vm880 = vcmp.eq.f32.partialorder %v623, %v822
    %vm881 = vcmp.eq.f32.partialorder %v625, %v859
    %vm882 = vcmp.eq.f32.partialorder %v629, %v822
    %vm883 = vcmp.eq.f32.partialorder %v631, %v859
    %vm884 = vcmp.eq.f32.partialorder %v635, %v822
    %vm885 = vcmp.eq.f32.partialorder %v637, %v859
    %vm886 = vcmp.eq.f32.partialorder %v641, %v822
    %vm887 = vcmp.eq.f32.partialorder %v643, %v859
    %vm888 = vcmp.eq.f32.partialorder %v647, %v822
    %vm889 = vcmp.eq.f32.partialorder %v649, %v859
    %vm890 = vcmp.eq.f32.partialorder %v653, %v822
    %vm891 = vcmp.eq.f32.partialorder %v655, %v859
    %vm892 = vcmp.eq.f32.partialorder %v659, %v822
    %vm893 = vcmp.eq.f32.partialorder %v661, %v859
    %vm894 = vcmp.eq.f32.partialorder %v665, %v822
    %vm895 = vcmp.eq.f32.partialorder %v667, %v859
    %vm896 = vcmp.eq.f32.partialorder %v671, %v822
    %vm897 = vcmp.eq.f32.partialorder %v673, %v859
    %vm898 = vcmp.eq.f32.partialorder %v677, %v822
    %vm899 = vcmp.eq.f32.partialorder %v679, %v859
    %vm900 = vcmp.eq.f32.partialorder %v683, %v822
    %vm901 = vcmp.eq.f32.partialorder %v685, %v859
    %vm902 = vcmp.eq.f32.partialorder %v689, %v822
    %vm903 = vcmp.eq.f32.partialorder %v691, %v859
    %vm904 = vcmp.eq.f32.partialorder %v695, %v822
    %vm905 = vcmp.eq.f32.partialorder %v697, %v859
    %vm906 = vcmp.eq.f32.partialorder %v701, %v822
    %vm907 = vcmp.eq.f32.partialorder %v703, %v859
    %vm908 = vcmp.eq.f32.partialorder %v707, %v822
    %vm909 = vcmp.eq.f32.partialorder %v709, %v859
    %vm910 = vcmp.eq.f32.partialorder %v713, %v822
    %vm911 = vcmp.eq.f32.partialorder %v715, %v859
    %vm912 = vcmp.eq.f32.partialorder %v719, %v822
    %vm913 = vcmp.eq.f32.partialorder %v721, %v859
    %vm914 = vcmp.eq.f32.partialorder %v725, %v822
    %vm915 = vcmp.eq.f32.partialorder %v727, %v859
    %vm916 = vcmp.eq.f32.partialorder %v731, %v822
    %vm917 = vcmp.eq.f32.partialorder %v733, %v859
    %vm918 = vcmp.eq.f32.partialorder %v737, %v822
    %vm919 = vcmp.eq.f32.partialorder %v739, %v859
    %vm920 = vcmp.eq.f32.partialorder %v743, %v822
    %vm921 = vcmp.eq.f32.partialorder %v745, %v859
    %vm922 = vcmp.eq.f32.partialorder %v749, %v822
    %vm923 = vcmp.eq.f32.partialorder %v751, %v859
    %v924 = vsel %vm860, %v754, 256
    %v925 = vsel %vm861, %v754, 256
    %v926 = vsel %vm862, %v755, 256
    %v927 = vsel %vm863, %v755, 256
    %v928 = vsel %vm864, %v756, 256
    %v929 = vsel %vm865, %v756, 256
    %v930 = vsel %vm866, %v757, 256
    %v931 = vsel %vm867, %v757, 256
    %v932 = vsel %vm868, %v758, 256
    %v933 = vsel %vm869, %v758, 256
    %v934 = vsel %vm870, %v759, 256
    %v935 = vsel %vm871, %v759, 256
    %v936 = vsel %vm872, %v760, 256
    %v937 = vsel %vm873, %v760, 256
    %v938 = vsel %vm874, %v761, 256
    %v939 = vsel %vm875, %v761, 256
    %v940 = vsel %vm876, %v762, 256
    %v941 = vsel %vm877, %v762, 256
    %v942 = vsel %vm878, %v763, 256
    %v943 = vsel %vm879, %v763, 256
    %v944 = vsel %vm880, %v764, 256
    %v945 = vsel %vm881, %v764, 256
    %v946 = vsel %vm882, %v765, 256
    %v947 = vsel %vm883, %v765, 256
    %v948 = vsel %vm884, %v766, 256
    %v949 = vsel %vm885, %v766, 256
    %v950 = vsel %vm886, %v767, 256
    %v951 = vsel %vm887, %v767, 256
    %v952 = vsel %vm888, %v768, 256
    %v953 = vsel %vm889, %v768, 256
    %v954 = vsel %vm890, %v769, 256
    %v955 = vsel %vm891, %v769, 256
    %v956 = vsel %vm892, %v770, 256
    %v957 = vsel %vm893, %v770, 256
    %v958 = vsel %vm894, %v771, 256
    %v959 = vsel %vm895, %v771, 256
    %v960 = vsel %vm896, %v772, 256
    %v961 = vsel %vm897, %v772, 256
    %v962 = vsel %vm898, %v773, 256
    %v963 = vsel %vm899, %v773, 256
    %v964 = vsel %vm900, %v774, 256
    %v965 = vsel %vm901, %v774, 256
    %v966 = vsel %vm902, %v775, 256
    %v967 = vsel %vm903, %v775, 256
    %v968 = vsel %vm904, %v776, 256
    %v969 = vsel %vm905, %v776, 256
    %v970 = vsel %vm906, %v777, 256
    %v971 = vsel %vm907, %v777, 256
    %v972 = vsel %vm908, %v778, 256
    %v973 = vsel %vm909, %v778, 256
    %v974 = vsel %vm910, %v779, 256
    %v975 = vsel %vm911, %v779, 256
    %v976 = vsel %vm912, %v780, 256
    %v977 = vsel %vm913, %v780, 256
    %v978 = vsel %vm914, %v781, 256
    %v979 = vsel %vm915, %v781, 256
    %v980 = vsel %vm916, %v782, 256
    %v981 = vsel %vm917, %v782, 256
    %v982 = vsel %vm918, %v783, 256
    %v983 = vsel %vm919, %v783, 256
    %v984 = vsel %vm920, %v784, 256
    %v985 = vsel %vm921, %v784, 256
    %v986 = vsel %vm922, %v785, 256
    %v987 = vsel %vm923, %v785, 256
    %vm988 = vcmp.lt.s32.totalorder %v924, %v928
    %v989 = vsel %vm988, %v924, %v928
    %vm990 = vcmp.lt.s32.totalorder %v926, %v930
    %v991 = vsel %vm990, %v926, %v930
    %vm992 = vcmp.lt.s32.totalorder %v989, %v932
    %v993 = vsel %vm992, %v989, %v932
    %vm994 = vcmp.lt.s32.totalorder %v991, %v934
    %v995 = vsel %vm994, %v991, %v934
    %vm996 = vcmp.lt.s32.totalorder %v993, %v936
    %v997 = vsel %vm996, %v993, %v936
    %vm998 = vcmp.lt.s32.totalorder %v995, %v938
    %v999 = vsel %vm998, %v995, %v938
    %vm1000 = vcmp.lt.s32.totalorder %v997, %v940
    %v1001 = vsel %vm1000, %v997, %v940
    %vm1002 = vcmp.lt.s32.totalorder %v999, %v942
    %v1003 = vsel %vm1002, %v999, %v942
    %vm1004 = vcmp.lt.s32.totalorder %v1001, %v944
    %v1005 = vsel %vm1004, %v1001, %v944
    %vm1006 = vcmp.lt.s32.totalorder %v1003, %v946
    %v1007 = vsel %vm1006, %v1003, %v946
    %vm1008 = vcmp.lt.s32.totalorder %v1005, %v948
    %v1009 = vsel %vm1008, %v1005, %v948
    %vm1010 = vcmp.lt.s32.totalorder %v1007, %v950
    %v1011 = vsel %vm1010, %v1007, %v950
    %vm1012 = vcmp.lt.s32.totalorder %v1009, %v952
    %v1013 = vsel %vm1012, %v1009, %v952
    %vm1014 = vcmp.lt.s32.totalorder %v1011, %v954
    %v1015 = vsel %vm1014, %v1011, %v954
    %vm1016 = vcmp.lt.s32.totalorder %v1013, %v956
    %v1017 = vsel %vm1016, %v1013, %v956
    %vm1018 = vcmp.lt.s32.totalorder %v1015, %v958
    %v1019 = vsel %vm1018, %v1015, %v958
    %vm1020 = vcmp.lt.s32.totalorder %v1017, %v960
    %v1021 = vsel %vm1020, %v1017, %v960
    %vm1022 = vcmp.lt.s32.totalorder %v1019, %v962
    %v1023 = vsel %vm1022, %v1019, %v962
    %vm1024 = vcmp.lt.s32.totalorder %v1021, %v964
    %v1025 = vsel %vm1024, %v1021, %v964
    %vm1026 = vcmp.lt.s32.totalorder %v1023, %v966
    %v1027 = vsel %vm1026, %v1023, %v966
    %vm1028 = vcmp.lt.s32.totalorder %v1025, %v968
    %v1029 = vsel %vm1028, %v1025, %v968
    %vm1030 = vcmp.lt.s32.totalorder %v1027, %v970
    %v1031 = vsel %vm1030, %v1027, %v970
    %vm1032 = vcmp.lt.s32.totalorder %v1029, %v972
    %v1033 = vsel %vm1032, %v1029, %v972
    %vm1034 = vcmp.lt.s32.totalorder %v1031, %v974
    %v1035 = vsel %vm1034, %v1031, %v974
    %vm1036 = vcmp.lt.s32.totalorder %v1033, %v976
    %v1037 = vsel %vm1036, %v1033, %v976
    %vm1038 = vcmp.lt.s32.totalorder %v1035, %v978
    %v1039 = vsel %vm1038, %v1035, %v978
    %vm1040 = vcmp.lt.s32.totalorder %v1037, %v980
    %v1041 = vsel %vm1040, %v1037, %v980
    %vm1042 = vcmp.lt.s32.totalorder %v1039, %v982
    %v1043 = vsel %vm1042, %v1039, %v982
    %vm1044 = vcmp.lt.s32.totalorder %v1041, %v984
    %v1045 = vsel %vm1044, %v1041, %v984
    %vm1046 = vcmp.lt.s32.totalorder %v1043, %v986
    %v1047 = vsel %vm1046, %v1043, %v986
    %vm1048 = vcmp.lt.s32.totalorder %v1045, %v1047
    %v1049 = vsel %vm1048, %v1045, %v1047
    %v1050 = vrot.slane %v1049, 4
    %vm1051 = vcmp.lt.s32.totalorder %v1049, %v1050
    %v1052 = vsel %vm1051, %v1049, %v1050
    %v1053 = vrot.slane %v1052, 2
    %vm1054 = vcmp.lt.s32.totalorder %v1052, %v1053
    %v1055 = vsel %vm1054, %v1052, %v1053
    %v1056 = vrot.slane %v1055, 1
    %vm1057 = vcmp.lt.s32.totalorder %v1055, %v1056
    %v1058 = vsel %vm1057, %v1055, %v1056
    %vm1059 = vcmp.lt.s32.totalorder %v925, %v929
    %v1060 = vsel %vm1059, %v925, %v929
    %vm1061 = vcmp.lt.s32.totalorder %v927, %v931
    %v1062 = vsel %vm1061, %v927, %v931
    %vm1063 = vcmp.lt.s32.totalorder %v1060, %v933
    %v1064 = vsel %vm1063, %v1060, %v933
    %vm1065 = vcmp.lt.s32.totalorder %v1062, %v935
    %v1066 = vsel %vm1065, %v1062, %v935
    %vm1067 = vcmp.lt.s32.totalorder %v1064, %v937
    %v1068 = vsel %vm1067, %v1064, %v937
    %vm1069 = vcmp.lt.s32.totalorder %v1066, %v939
    %v1070 = vsel %vm1069, %v1066, %v939
    %vm1071 = vcmp.lt.s32.totalorder %v1068, %v941
    %v1072 = vsel %vm1071, %v1068, %v941
    %vm1073 = vcmp.lt.s32.totalorder %v1070, %v943
    %v1074 = vsel %vm1073, %v1070, %v943
    %vm1075 = vcmp.lt.s32.totalorder %v1072, %v945
    %v1076 = vsel %vm1075, %v1072, %v945
    %vm1077 = vcmp.lt.s32.totalorder %v1074, %v947
    %v1078 = vsel %vm1077, %v1074, %v947
    %vm1079 = vcmp.lt.s32.totalorder %v1076, %v949
    %v1080 = vsel %vm1079, %v1076, %v949
    %vm1081 = vcmp.lt.s32.totalorder %v1078, %v951
    %v1082 = vsel %vm1081, %v1078, %v951
    %vm1083 = vcmp.lt.s32.totalorder %v1080, %v953
    %v1084 = vsel %vm1083, %v1080, %v953
    %vm1085 = vcmp.lt.s32.totalorder %v1082, %v955
    %v1086 = vsel %vm1085, %v1082, %v955
    %vm1087 = vcmp.lt.s32.totalorder %v1084, %v957
    %v1088 = vsel %vm1087, %v1084, %v957
    %vm1089 = vcmp.lt.s32.totalorder %v1086, %v959
    %v1090 = vsel %vm1089, %v1086, %v959
    %vm1091 = vcmp.lt.s32.totalorder %v1088, %v961
    %v1092 = vsel %vm1091, %v1088, %v961
    %vm1093 = vcmp.lt.s32.totalorder %v1090, %v963
    %v1094 = vsel %vm1093, %v1090, %v963
    %vm1095 = vcmp.lt.s32.totalorder %v1092, %v965
    %v1096 = vsel %vm1095, %v1092, %v965
    %vm1097 = vcmp.lt.s32.totalorder %v1094, %v967
    %v1098 = vsel %vm1097, %v1094, %v967
    %vm1099 = vcmp.lt.s32.totalorder %v1096, %v969
    %v1100 = vsel %vm1099, %v1096, %v969
    %vm1101 = vcmp.lt.s32.totalorder %v1098, %v971
    %v1102 = vsel %vm1101, %v1098, %v971
    %vm1103 = vcmp.lt.s32.totalorder %v1100, %v973
    %v1104 = vsel %vm1103, %v1100, %v973
    %vm1105 = vcmp.lt.s32.totalorder %v1102, %v975
    %v1106 = vsel %vm1105, %v1102, %v975
    %vm1107 = vcmp.lt.s32.totalorder %v1104, %v977
    %v1108 = vsel %vm1107, %v1104, %v977
    %vm1109 = vcmp.lt.s32.totalorder %v1106, %v979
    %v1110 = vsel %vm1109, %v1106, %v979
    %vm1111 = vcmp.lt.s32.totalorder %v1108, %v981
    %v1112 = vsel %vm1111, %v1108, %v981
    %vm1113 = vcmp.lt.s32.totalorder %v1110, %v983
    %v1114 = vsel %vm1113, %v1110, %v983
    %vm1115 = vcmp.lt.s32.totalorder %v1112, %v985
    %v1116 = vsel %vm1115, %v1112, %v985
    %vm1117 = vcmp.lt.s32.totalorder %v1114, %v987
    %v1118 = vsel %vm1117, %v1114, %v987
    %vm1119 = vcmp.lt.s32.totalorder %v1116, %v1118
    %v1120 = vsel %vm1119, %v1116, %v1118
    %v1121 = vrot.slane %v1120, 4
    %vm1122 = vcmp.lt.s32.totalorder %v1120, %v1121
    %v1123 = vsel %vm1122, %v1120, %v1121
    %v1124 = vrot.slane %v1123, 2
    %vm1125 = vcmp.lt.s32.totalorder %v1123, %v1124
    %v1126 = vsel %vm1125, %v1123, %v1124
    %v1127 = vrot.slane %v1126, 1
    %vm1128 = vcmp.lt.s32.totalorder %v1126, %v1127
    %v1129 = vsel %vm1128, %v1126, %v1127
    %v1130 = vcombine.low %v1058, %v1129
    %v1132 = vunpack.c.l.s4 1966171168
    %v1133 = vunpack.c.0.s8 %v1132
    %v1134 = vlaneseq
    %v1135 = vshrl.u32 %v1134, 7
    %v1136 = vsub.s32 %v1133, %v1135
    %v1137 = vrot.slane %v1130, %v1136
    %v1139 = vunpack.c.l.s4 1966171168
    %v1140 = vunpack.c.0.s8 %v1139
    %v1141 = vlaneseq
    %v1142 = vshrl.u32 %v1141, 7
    %v1143 = vsub.s32 %v1140, %v1142
    %v1144 = vrot.slane %v1137, %v1143
    %v1145 = vlaneseq
    %vm1146 = vcmp.ge.s32.totalorder %v1145, 0
    %vm1147 = vcmp.lt.s32.totalorder %v1145, 256
    %vm1148 = vmand %vm1146, %vm1147
    %1149 = vst.msk [vmem:[#allocation2] sm:$0x3] %vm1148, %v1144
    %v1150 = vmul.f32 %v822, 2.0
    %v1151 = vmul.f32 %v859, 2.0
    %v1152 = vsub.f32 2.0, %v1150
    %v1153 = vsub.f32 2.0, %v1151
    %v1156 = vcombine.low %v1152, %v1153
    %v1158 = vunpack.c.l.s4 1966171168
    %v1159 = vunpack.c.0.s8 %v1158
    %v1160 = vlaneseq
    %v1161 = vshrl.u32 %v1160, 7
    %v1162 = vsub.s32 %v1159, %v1161
    %v1163 = vrot.slane %v1156, %v1162
    %v1165 = vunpack.c.l.s4 1966171168
    %v1166 = vunpack.c.0.s8 %v1165
    %v1167 = vlaneseq
    %v1168 = vshrl.u32 %v1167, 7
    %v1169 = vsub.s32 %v1166, %v1168
    %v1170 = vrot.slane %v1163, %v1169
    %1172 = vst.msk [vmem:[#allocation4] sm:$0x3] %vm1148, %v1170
    // Predicated region
    $region10: #{tpu_custom_call.1} parent=1 // pred_check
      _
    $region11: #{tpu_custom_call.1} parent=1 // pred_check_branch
      %1174 = sbr.rel (0) target = $region13
    $region12: #{tpu_custom_call.1} parent=1 // pred_region
      %s1176 = ssub.s32 32, 32
      %1177 = vsyncadd [#allocation3], %s1176
      %s1179 = sshll.u32 [#allocation2], 4
      %s1180 = int_to_ptr.vmem [resolvable:$true] %s1179
      %1182 = dma.vmem_to_hbm [thread:$0]  %s1180, 32, %s2, [#allocation3]
    $region13: #{tpu_custom_call.1} parent=1 // pred_fallthru
      _
    // Predicated region
    $region14: #{tpu_custom_call.1} parent=1 // pred_check
      _
    $region15: #{tpu_custom_call.1} parent=1 // pred_check_branch
      %1184 = sbr.rel (0) target = $region17
    $region16: #{tpu_custom_call.1} parent=1 // pred_region
      %s1186 = ssub.s32 32, 32
      %1187 = vsyncadd [#allocation5], %s1186
      %s1189 = sshll.u32 [#allocation4], 4
      %s1190 = int_to_ptr.vmem [resolvable:$true] %s1189
      %1192 = dma.vmem_to_hbm [thread:$0]  %s1190, 32, %s3, [#allocation5]
    $region17: #{tpu_custom_call.1} parent=1 // pred_fallthru
      _
    // Predicated region
    $region18: #{tpu_custom_call.1} parent=1 // pred_check
      _
    $region19: #{tpu_custom_call.1} parent=1 // pred_check_branch
      %1194 = sbr.rel (0) target = $region21
    $region20: #{tpu_custom_call.1} parent=1 // pred_region
      %1195 = dma.done [#allocation3], 32
    $region21: #{tpu_custom_call.1} parent=1 // pred_fallthru
      _
    // Predicated region
    $region22: #{tpu_custom_call.1} parent=1 // pred_check
      _
    $region23: #{tpu_custom_call.1} parent=1 // pred_check_branch
      %1197 = sbr.rel (0) target = $region25
    $region24: #{tpu_custom_call.1} parent=1 // pred_region
      %1198 = dma.done [#allocation5], 32
    $region25: #{tpu_custom_call.1} parent=1 // pred_fallthru
      _
    %1199 = vsyncpa [#allocation3], 1
    %1200 = vsyncpa [#allocation5], 1

</llo_original>
